<compile_context>
chip_gen: v7x
topology: tpu7x:2x2x1
jax: 0.10.0
libtpu: 0.0.40
codegen_flags: <defaults>
</compile_context>

<pallas_src>
import functools
import math

import jax
import jax.numpy as jnp
from jax.experimental import pallas as pl
from jax.experimental.pallas import tpu as pltpu


def dueling_dqn_kernel(x_ref,
                       w1_ref, b1_ref,
                       w2_ref, b2_ref,
                       w_va_ref, b_va_ref,
                       w_out_ref, b_out_ref,
                       q_ref, *, action_dim):
    # bf16 operands on the MXU, f32 accumulation + f32 elementwise (v5e-safe).
    x = x_ref[...]

    # feature_layer: Linear -> ReLU -> Linear -> ReLU
    h = jnp.dot(x, w1_ref[...], preferred_element_type=jnp.float32) + b1_ref[...]
    h = jnp.maximum(h, 0.0).astype(jnp.bfloat16)
    h = jnp.dot(h, w2_ref[...], preferred_element_type=jnp.float32) + b2_ref[...]
    h = jnp.maximum(h, 0.0).astype(jnp.bfloat16)

    # fused value/advantage first layers: one (H_p, 2*H_p) matmul
    va = jnp.dot(h, w_va_ref[...], preferred_element_type=jnp.float32) + b_va_ref[...]
    va = jnp.maximum(va, 0.0).astype(jnp.bfloat16)

    # fused block-diagonal output: columns = [V | A | zero-pad to 128 lanes]
    va_out = jnp.dot(va, w_out_ref[...], preferred_element_type=jnp.float32) + b_out_ref[...]

    v = va_out[:, 0:1]                        # (tile_b, 1)
    a = va_out[:, 1:1 + action_dim]           # (tile_b, A): real action columns only
    corr = v - jnp.mean(a, axis=1, keepdims=True)
    # single lane-dense store: q lives in columns 1..A of the 128-wide slab,
    # the remaining columns hold junk and are sliced off in the wrapper.
    q_ref[...] = va_out + corr


def _round_up(n, m):
    return pl.cdiv(n, m) * m


def _pad2(a, rows, cols):
    return jnp.pad(a, ((0, rows - a.shape[0]), (0, cols - a.shape[1])))


def _fuse_params(params, hidden_p, out_p):
    """Fused (H_p, 2H_p) stream weight + block-diagonal (2H_p, out_p) output weight."""
    hidden = params["w1"].shape[1]
    action_dim = params["wa2"].shape[1]

    w_va = jnp.zeros((hidden_p, 2 * hidden_p), jnp.float32)
    w_va = w_va.at[:hidden, :hidden].set(params["wv1"])
    w_va = w_va.at[:hidden, hidden_p:hidden_p + hidden].set(params["wa1"])
    b_va = jnp.zeros((1, 2 * hidden_p), jnp.float32)
    b_va = b_va.at[:, :hidden].set(params["bv1"])
    b_va = b_va.at[:, hidden_p:hidden_p + hidden].set(params["ba1"])

    w_out = jnp.zeros((2 * hidden_p, out_p), jnp.float32)
    w_out = w_out.at[:hidden, 0:1].set(params["wv2"])                                   # V block
    w_out = w_out.at[hidden_p:hidden_p + hidden, 1:1 + action_dim].set(params["wa2"])   # A block
    b_out = jnp.zeros((1, out_p), jnp.float32)
    b_out = b_out.at[:, 0:1].set(params["bv2"])
    b_out = b_out.at[:, 1:1 + action_dim].set(params["ba2"])
    return w_va, b_va, w_out, b_out


def dueling_dqn_forward(x, params, *, tile_b_max=256):
    """Dueling DQN forward pass as one batch-gridded pallas_call."""
    batch, state_dim = x.shape
    hidden = params["w1"].shape[1]
    action_dim = params["wa2"].shape[1]

    # pad every matmul dimension up to the 128x128 MXU tile
    state_p = _round_up(state_dim, 128)
    hidden_p = _round_up(hidden, 128)
    out_p = _round_up(1 + action_dim, 128)

    w_va, b_va, w_out, b_out = _fuse_params(params, hidden_p, out_p)
    # matmul operands -> bf16; biases stay f32 (added to f32 accumulators)
    w1 = _pad2(params["w1"], state_p, hidden_p).astype(jnp.bfloat16)
    w2 = _pad2(params["w2"], hidden_p, hidden_p).astype(jnp.bfloat16)
    w_va = w_va.astype(jnp.bfloat16)
    w_out = w_out.astype(jnp.bfloat16)
    b1 = _pad2(params["b1"], 1, hidden_p)
    b2 = _pad2(params["b2"], 1, hidden_p)

    # batch tiling: rows padded to a multiple of 128; >= 2 grid steps once the
    # batch is big enough, so the "parallel" axis shards v7x's two TensorCores
    # and the x/q DMAs overlap with the matmuls.
    padded = max(128, _round_up(batch, 128))
    tile_b = 128 if padded <= 512 else max(128, (min(tile_b_max, 256) // 128) * 128)
    padded = _round_up(padded, tile_b)
    nb = padded // tile_b

    x_p = jnp.pad(x, ((0, padded - batch), (0, state_p - state_dim))).astype(jnp.bfloat16)

    weights = (w1, b1, w2, b2, w_va, b_va, w_out, b_out)

    # rough VMEM budget: resident weights/biases + double-buffered x/q tiles
    # + f32 intermediates; only raise the scoped limit when actually needed.
    weight_bytes = sum(int(a.size) * a.dtype.itemsize for a in weights)
    io_bytes = 2 * (tile_b * state_p * 2 + tile_b * out_p * 4)
    act_bytes = 3 * tile_b * (2 * hidden_p) * 4
    est_bytes = 2 * weight_bytes + io_bytes + act_bytes
    vmem_limit = None
    if est_bytes > 28 * 2 ** 20:
        vmem_limit = int(min(est_bytes * 5 // 4, 64 * 2 ** 20))

    cost = pl.CostEstimate(
        flops=2 * padded * (state_p * hidden_p + hidden_p * hidden_p
                            + hidden_p * 2 * hidden_p + 2 * hidden_p * out_p),
        transcendentals=0,
        bytes_accessed=int(x_p.size) * 2 + weight_bytes + padded * out_p * 4,
    )

    kernel = functools.partial(dueling_dqn_kernel, action_dim=action_dim)

    def make_call(single_buffer_weights):
        def resident(shape):
            # weights/biases: constant index_map -> DMA'd once; single-buffer
            # them so they do not pay 2x VMEM.
            if single_buffer_weights:
                return pl.BlockSpec(shape, lambda i: (0, 0),
                                    pipeline_mode=pl.Buffered(1))
            return pl.BlockSpec(shape, lambda i: (0, 0))

        return pl.pallas_call(
            kernel,
            out_shape=jax.ShapeDtypeStruct((padded, out_p), jnp.float32),
            grid=(nb,),
            in_specs=[pl.BlockSpec((tile_b, state_p), lambda i: (i, 0))]
                     + [resident(w.shape) for w in weights],
            out_specs=pl.BlockSpec((tile_b, out_p), lambda i: (i, 0)),
            compiler_params=pltpu.CompilerParams(
                dimension_semantics=("parallel",),
                vmem_limit_bytes=vmem_limit),
            cost_estimate=cost,
        )

    try:
        q_slab = make_call(hasattr(pl, "Buffered"))(x_p, *weights)
    except Exception:  # pl.Buffered(1) unsupported on this build -> default buffering
        q_slab = make_call(False)(x_p, *weights)

    # q occupies columns 1 .. action_dim of the lane-dense slab
    return q_slab[:batch, 1:1 + action_dim]


def xavier_uniform(key, fan_in, fan_out):
    """Matches torch.nn.init.xavier_uniform_ (gain=1); stored (in, out) for x @ W."""
    bound = math.sqrt(6.0 / (fan_in + fan_out))
    return jax.random.uniform(key, (fan_in, fan_out), jnp.float32, -bound, bound)


def init_params(key, state_dim, action_dim, hidden_dim):
    keys = jax.random.split(key, 6)
    bias = lambda n: jnp.full((1, n), 0.01, jnp.float32)  # nn.init.constant_(bias, 0.01)
    return {
        # feature layer
        "w1": xavier_uniform(keys[0], state_dim, hidden_dim), "b1": bias(hidden_dim),
        "w2": xavier_uniform(keys[1], hidden_dim, hidden_dim), "b2": bias(hidden_dim),
        # value stream
        "wv1": xavier_uniform(keys[2], hidden_dim, hidden_dim), "bv1": bias(hidden_dim),
        "wv2": xavier_uniform(keys[3], hidden_dim, 1), "bv2": bias(1),
        # advantage stream
        "wa1": xavier_uniform(keys[4], hidden_dim, hidden_dim), "ba1": bias(hidden_dim),
        "wa2": xavier_uniform(keys[5], hidden_dim, action_dim), "ba2": bias(action_dim),
    }


def reference_forward(x, p):
    """Plain-JAX reference mirroring the PyTorch module (same bf16 MXU operands)."""
    bf = lambda t: t.astype(jnp.bfloat16)
    dot = lambda a, b: jnp.dot(bf(a), bf(b), preferred_element_type=jnp.float32)
    h = jnp.maximum(dot(x, p["w1"]) + p["b1"], 0.0)
    h = jnp.maximum(dot(h, p["w2"]) + p["b2"], 0.0)
    v = dot(jnp.maximum(dot(h, p["wv1"]) + p["bv1"], 0.0), p["wv2"]) + p["bv2"]
    a = dot(jnp.maximum(dot(h, p["wa1"]) + p["ba1"], 0.0), p["wa2"]) + p["ba2"]
    return v + (a - a.mean(axis=1, keepdims=True))


if __name__ == "__main__":
    key = jax.random.PRNGKey(0)
    k_params, k_x = jax.random.split(key)

    batch, state_dim, action_dim, hidden_dim = 8, 16, 4, 32
    params = init_params(k_params, state_dim, action_dim, hidden_dim)
    x = jax.random.normal(k_x, (batch, state_dim), jnp.float32)

    q = jax.block_until_ready(dueling_dqn_forward(x, params))
    q_ref = reference_forward(x, params)

    assert q.shape == (batch, action_dim)
    assert jnp.allclose(q, q_ref, atol=2e-3, rtol=2e-3), \
        float(jnp.max(jnp.abs(q - q_ref)))

    print("KERNEL_OK")
</pallas_src>

<mosaic_0001>
module attributes {stable_mosaic.version = 11 : i64} {
  func.func @dueling_dqn_kernel(%arg0: i32, %arg1: memref<128x128xbf16, #tpu.memory_space<vmem>>, %arg2: memref<128x128xbf16, #tpu.memory_space<vmem>>, %arg3: memref<1x128xf32, #tpu.memory_space<vmem>>, %arg4: memref<128x128xbf16, #tpu.memory_space<vmem>>, %arg5: memref<1x128xf32, #tpu.memory_space<vmem>>, %arg6: memref<128x256xbf16, #tpu.memory_space<vmem>>, %arg7: memref<1x256xf32, #tpu.memory_space<vmem>>, %arg8: memref<256x128xbf16, #tpu.memory_space<vmem>>, %arg9: memref<1x128xf32, #tpu.memory_space<vmem>>, %arg10: memref<128x128xf32, #tpu.memory_space<vmem>>) attributes {dimension_semantics = [#tpu.dimension_semantics<parallel>], iteration_bounds = array<i64: 1>, scalar_prefetch = 0 : i64, scratch_operands = 0 : i64, tpu.core_type = #tpu.core_type<tc>, window_params = [{transform_indices = @transform_0, window_bounds = array<i64: 128, 128>}, {pipeline_mode = #tpu.pipeline_mode<synchronous>, transform_indices = @transform_1, window_bounds = array<i64: 128, 128>}, {pipeline_mode = #tpu.pipeline_mode<synchronous>, transform_indices = @transform_2, window_bounds = array<i64: 1, 128>}, {pipeline_mode = #tpu.pipeline_mode<synchronous>, transform_indices = @transform_3, window_bounds = array<i64: 128, 128>}, {pipeline_mode = #tpu.pipeline_mode<synchronous>, transform_indices = @transform_4, window_bounds = array<i64: 1, 128>}, {pipeline_mode = #tpu.pipeline_mode<synchronous>, transform_indices = @transform_5, window_bounds = array<i64: 128, 256>}, {pipeline_mode = #tpu.pipeline_mode<synchronous>, transform_indices = @transform_6, window_bounds = array<i64: 1, 256>}, {pipeline_mode = #tpu.pipeline_mode<synchronous>, transform_indices = @transform_7, window_bounds = array<i64: 256, 128>}, {pipeline_mode = #tpu.pipeline_mode<synchronous>, transform_indices = @transform_8, window_bounds = array<i64: 1, 128>}, {transform_indices = @transform_9, window_bounds = array<i64: 128, 128>}]} {
    %c0 = arith.constant 0 : index
    %c0_0 = arith.constant 0 : index
    %0 = vector.load %arg1[%c0, %c0_0] : memref<128x128xbf16, #tpu.memory_space<vmem>>, vector<128x128xbf16>
    %c0_1 = arith.constant 0 : index
    %c0_2 = arith.constant 0 : index
    %1 = vector.load %arg2[%c0_1, %c0_2] : memref<128x128xbf16, #tpu.memory_space<vmem>>, vector<128x128xbf16>
    %cst = arith.constant dense<0.000000e+00> : vector<128x128xf32>
    %2 = tpu.matmul %0, %1, %cst {dimension_numbers = #tpu.dot_dimension_numbers<[1], [0], [0], [1], [0, 0, 1, 1], [], []>} : vector<128x128xbf16>, vector<128x128xbf16>, vector<128x128xf32> -> vector<128x128xf32>
    %c0_3 = arith.constant 0 : index
    %c0_4 = arith.constant 0 : index
    %3 = vector.load %arg3[%c0_3, %c0_4] : memref<1x128xf32, #tpu.memory_space<vmem>>, vector<1x128xf32>
    %4 = vector.broadcast %3 : vector<1x128xf32> to vector<128x128xf32>
    %5 = arith.addf %2, %4 : vector<128x128xf32>
    %cst_5 = arith.constant 0.000000e+00 : f32
    %6 = vector.broadcast %cst_5 : f32 to vector<128x128xf32>
    %7 = arith.maximumf %5, %6 : vector<128x128xf32>
    %8 = arith.truncf %7 : vector<128x128xf32> to vector<128x128xbf16>
    %c0_6 = arith.constant 0 : index
    %c0_7 = arith.constant 0 : index
    %9 = vector.load %arg4[%c0_6, %c0_7] : memref<128x128xbf16, #tpu.memory_space<vmem>>, vector<128x128xbf16>
    %cst_8 = arith.constant dense<0.000000e+00> : vector<128x128xf32>
    %10 = tpu.matmul %8, %9, %cst_8 {dimension_numbers = #tpu.dot_dimension_numbers<[1], [0], [0], [1], [0, 0, 1, 1], [], []>} : vector<128x128xbf16>, vector<128x128xbf16>, vector<128x128xf32> -> vector<128x128xf32>
    %c0_9 = arith.constant 0 : index
    %c0_10 = arith.constant 0 : index
    %11 = vector.load %arg5[%c0_9, %c0_10] : memref<1x128xf32, #tpu.memory_space<vmem>>, vector<1x128xf32>
    %12 = vector.broadcast %11 : vector<1x128xf32> to vector<128x128xf32>
    %13 = arith.addf %10, %12 : vector<128x128xf32>
    %cst_11 = arith.constant 0.000000e+00 : f32
    %14 = vector.broadcast %cst_11 : f32 to vector<128x128xf32>
    %15 = arith.maximumf %13, %14 : vector<128x128xf32>
    %16 = arith.truncf %15 : vector<128x128xf32> to vector<128x128xbf16>
    %c0_12 = arith.constant 0 : index
    %c0_13 = arith.constant 0 : index
    %17 = vector.load %arg6[%c0_12, %c0_13] : memref<128x256xbf16, #tpu.memory_space<vmem>>, vector<128x256xbf16>
    %cst_14 = arith.constant dense<0.000000e+00> : vector<128x256xf32>
    %18 = tpu.matmul %16, %17, %cst_14 {dimension_numbers = #tpu.dot_dimension_numbers<[1], [0], [0], [1], [0, 0, 1, 1], [], []>} : vector<128x128xbf16>, vector<128x256xbf16>, vector<128x256xf32> -> vector<128x256xf32>
    %c0_15 = arith.constant 0 : index
    %c0_16 = arith.constant 0 : index
    %19 = vector.load %arg7[%c0_15, %c0_16] : memref<1x256xf32, #tpu.memory_space<vmem>>, vector<1x256xf32>
    %20 = vector.broadcast %19 : vector<1x256xf32> to vector<128x256xf32>
    %21 = arith.addf %18, %20 : vector<128x256xf32>
    %cst_17 = arith.constant 0.000000e+00 : f32
    %22 = vector.broadcast %cst_17 : f32 to vector<128x256xf32>
    %23 = arith.maximumf %21, %22 : vector<128x256xf32>
    %24 = arith.truncf %23 : vector<128x256xf32> to vector<128x256xbf16>
    %c0_18 = arith.constant 0 : index
    %c0_19 = arith.constant 0 : index
    %25 = vector.load %arg8[%c0_18, %c0_19] : memref<256x128xbf16, #tpu.memory_space<vmem>>, vector<256x128xbf16>
    %cst_20 = arith.constant dense<0.000000e+00> : vector<128x128xf32>
    %26 = tpu.matmul %24, %25, %cst_20 {dimension_numbers = #tpu.dot_dimension_numbers<[1], [0], [0], [1], [0, 0, 1, 1], [], []>} : vector<128x256xbf16>, vector<256x128xbf16>, vector<128x128xf32> -> vector<128x128xf32>
    %c0_21 = arith.constant 0 : index
    %c0_22 = arith.constant 0 : index
    %27 = vector.load %arg9[%c0_21, %c0_22] : memref<1x128xf32, #tpu.memory_space<vmem>>, vector<1x128xf32>
    %28 = vector.broadcast %27 : vector<1x128xf32> to vector<128x128xf32>
    %29 = arith.addf %26, %28 : vector<128x128xf32>
    %30 = vector.extract_strided_slice %29 {offsets = [0, 0], sizes = [128, 1], strides = [1, 1]} : vector<128x128xf32> to vector<128x1xf32>
    %31 = vector.extract_strided_slice %29 {offsets = [0, 1], sizes = [128, 4], strides = [1, 1]} : vector<128x128xf32> to vector<128x4xf32>
    %cst_23 = arith.constant dense<0.000000e+00> : vector<128xf32>
    %32 = vector.multi_reduction <add>, %31, %cst_23 [1] : vector<128x4xf32> to vector<128xf32>
    %33 = vector.shape_cast %32 : vector<128xf32> to vector<128x1xf32>
    %cst_24 = arith.constant 4.000000e+00 : f32
    %34 = vector.broadcast %cst_24 : f32 to vector<128x1xf32>
    %35 = arith.divf %33, %34 : vector<128x1xf32>
    %36 = arith.subf %30, %35 : vector<128x1xf32>
    %37 = vector.broadcast %36 : vector<128x1xf32> to vector<128x128xf32>
    %38 = arith.addf %29, %37 : vector<128x128xf32>
    %c0_25 = arith.constant 0 : index
    %c0_26 = arith.constant 0 : index
    %39 = vector.load %arg10[%c0_25, %c0_26] : memref<128x128xf32, #tpu.memory_space<vmem>>, vector<128x128xf32>
    tpu.vector_store %arg10[%c0_25, %c0_26], %38 {strides = array<i32>} : memref<128x128xf32, #tpu.memory_space<vmem>>, vector<128x128xf32>,
    return
  }
  func.func @transform_0(%arg0: i32) -> (i32, i32) {
    %c0_i32 = arith.constant 0 : i32
    %c0_i32_0 = arith.constant 0 : i32
    return %arg0, %c0_i32 : i32, i32
  }
  func.func @transform_1(%arg0: i32) -> (i32, i32) {
    %c0_i32 = arith.constant 0 : i32
    %c0_i32_0 = arith.constant 0 : i32
    %c0_i32_1 = arith.constant 0 : i32
    return %c0_i32, %c0_i32_0 : i32, i32
  }
  func.func @transform_2(%arg0: i32) -> (i32, i32) {
    %c0_i32 = arith.constant 0 : i32
    %c0_i32_0 = arith.constant 0 : i32
    %c0_i32_1 = arith.constant 0 : i32
    return %c0_i32, %c0_i32_0 : i32, i32
  }
  func.func @transform_3(%arg0: i32) -> (i32, i32) {
    %c0_i32 = arith.constant 0 : i32
    %c0_i32_0 = arith.constant 0 : i32
    %c0_i32_1 = arith.constant 0 : i32
    return %c0_i32, %c0_i32_0 : i32, i32
  }
  func.func @transform_4(%arg0: i32) -> (i32, i32) {
    %c0_i32 = arith.constant 0 : i32
    %c0_i32_0 = arith.constant 0 : i32
    %c0_i32_1 = arith.constant 0 : i32
    return %c0_i32, %c0_i32_0 : i32, i32
  }
  func.func @transform_5(%arg0: i32) -> (i32, i32) {
    %c0_i32 = arith.constant 0 : i32
    %c0_i32_0 = arith.constant 0 : i32
    %c0_i32_1 = arith.constant 0 : i32
    return %c0_i32, %c0_i32_0 : i32, i32
  }
  func.func @transform_6(%arg0: i32) -> (i32, i32) {
    %c0_i32 = arith.constant 0 : i32
    %c0_i32_0 = arith.constant 0 : i32
    %c0_i32_1 = arith.constant 0 : i32
    return %c0_i32, %c0_i32_0 : i32, i32
  }
  func.func @transform_7(%arg0: i32) -> (i32, i32) {
    %c0_i32 = arith.constant 0 : i32
    %c0_i32_0 = arith.constant 0 : i32
    %c0_i32_1 = arith.constant 0 : i32
    return %c0_i32, %c0_i32_0 : i32, i32
  }
  func.func @transform_8(%arg0: i32) -> (i32, i32) {
    %c0_i32 = arith.constant 0 : i32
    %c0_i32_0 = arith.constant 0 : i32
    %c0_i32_1 = arith.constant 0 : i32
    return %c0_i32, %c0_i32_0 : i32, i32
  }
  func.func @transform_9(%arg0: i32) -> (i32, i32) {
    %c0_i32 = arith.constant 0 : i32
    %c0_i32_0 = arith.constant 0 : i32
    return %arg0, %c0_i32 : i32, i32
  }
}

module attributes {stable_mosaic.version = 11 : i64} {
  func.func @dueling_dqn_kernel(%arg0: i32, %arg1: memref<128x128xbf16, #tpu.memory_space<vmem>>, %arg2: memref<128x128xbf16, #tpu.memory_space<vmem>>, %arg3: memref<1x128xf32, #tpu.memory_space<vmem>>, %arg4: memref<128x128xbf16, #tpu.memory_space<vmem>>, %arg5: memref<1x128xf32, #tpu.memory_space<vmem>>, %arg6: memref<128x256xbf16, #tpu.memory_space<vmem>>, %arg7: memref<1x256xf32, #tpu.memory_space<vmem>>, %arg8: memref<256x128xbf16, #tpu.memory_space<vmem>>, %arg9: memref<1x128xf32, #tpu.memory_space<vmem>>, %arg10: memref<128x128xf32, #tpu.memory_space<vmem>>) attributes {dimension_semantics = [#tpu.dimension_semantics<parallel>], iteration_bounds = array<i64: 1>, scalar_prefetch = 0 : i64, scratch_operands = 0 : i64, tpu.core_type = #tpu.core_type<tc>, window_params = [{transform_indices = @transform_0, window_bounds = array<i64: 128, 128>}, {pipeline_mode = #tpu.pipeline_mode<synchronous>, transform_indices = @transform_1, window_bounds = array<i64: 128, 128>}, {pipeline_mode = #tpu.pipeline_mode<synchronous>, transform_indices = @transform_2, window_bounds = array<i64: 1, 128>}, {pipeline_mode = #tpu.pipeline_mode<synchronous>, transform_indices = @transform_3, window_bounds = array<i64: 128, 128>}, {pipeline_mode = #tpu.pipeline_mode<synchronous>, transform_indices = @transform_4, window_bounds = array<i64: 1, 128>}, {pipeline_mode = #tpu.pipeline_mode<synchronous>, transform_indices = @transform_5, window_bounds = array<i64: 128, 256>}, {pipeline_mode = #tpu.pipeline_mode<synchronous>, transform_indices = @transform_6, window_bounds = array<i64: 1, 256>}, {pipeline_mode = #tpu.pipeline_mode<synchronous>, transform_indices = @transform_7, window_bounds = array<i64: 256, 128>}, {pipeline_mode = #tpu.pipeline_mode<synchronous>, transform_indices = @transform_8, window_bounds = array<i64: 1, 128>}, {transform_indices = @transform_9, window_bounds = array<i64: 128, 128>}]} {
    %c0 = arith.constant 0 : index
    %c0_0 = arith.constant 0 : index
    %0 = vector.load %arg1[%c0, %c0_0] : memref<128x128xbf16, #tpu.memory_space<vmem>>, vector<128x128xbf16>
    %c0_1 = arith.constant 0 : index
    %c0_2 = arith.constant 0 : index
    %1 = vector.load %arg2[%c0_1, %c0_2] : memref<128x128xbf16, #tpu.memory_space<vmem>>, vector<128x128xbf16>
    %cst = arith.constant dense<0.000000e+00> : vector<128x128xf32>
    %2 = tpu.matmul %0, %1, %cst {dimension_numbers = #tpu.dot_dimension_numbers<[1], [0], [0], [1], [0, 0, 1, 1], [], []>} : vector<128x128xbf16>, vector<128x128xbf16>, vector<128x128xf32> -> vector<128x128xf32>
    %c0_3 = arith.constant 0 : index
    %c0_4 = arith.constant 0 : index
    %3 = vector.load %arg3[%c0_3, %c0_4] : memref<1x128xf32, #tpu.memory_space<vmem>>, vector<1x128xf32>
    %4 = vector.broadcast %3 : vector<1x128xf32> to vector<128x128xf32>
    %5 = arith.addf %2, %4 : vector<128x128xf32>
    %cst_5 = arith.constant 0.000000e+00 : f32
    %6 = vector.broadcast %cst_5 : f32 to vector<128x128xf32>
    %7 = arith.maximumf %5, %6 : vector<128x128xf32>
    %8 = arith.truncf %7 : vector<128x128xf32> to vector<128x128xbf16>
    %c0_6 = arith.constant 0 : index
    %c0_7 = arith.constant 0 : index
    %9 = vector.load %arg4[%c0_6, %c0_7] : memref<128x128xbf16, #tpu.memory_space<vmem>>, vector<128x128xbf16>
    %cst_8 = arith.constant dense<0.000000e+00> : vector<128x128xf32>
    %10 = tpu.matmul %8, %9, %cst_8 {dimension_numbers = #tpu.dot_dimension_numbers<[1], [0], [0], [1], [0, 0, 1, 1], [], []>} : vector<128x128xbf16>, vector<128x128xbf16>, vector<128x128xf32> -> vector<128x128xf32>
    %c0_9 = arith.constant 0 : index
    %c0_10 = arith.constant 0 : index
    %11 = vector.load %arg5[%c0_9, %c0_10] : memref<1x128xf32, #tpu.memory_space<vmem>>, vector<1x128xf32>
    %12 = vector.broadcast %11 : vector<1x128xf32> to vector<128x128xf32>
    %13 = arith.addf %10, %12 : vector<128x128xf32>
    %cst_11 = arith.constant 0.000000e+00 : f32
    %14 = vector.broadcast %cst_11 : f32 to vector<128x128xf32>
    %15 = arith.maximumf %13, %14 : vector<128x128xf32>
    %16 = arith.truncf %15 : vector<128x128xf32> to vector<128x128xbf16>
    %c0_12 = arith.constant 0 : index
    %c0_13 = arith.constant 0 : index
    %17 = vector.load %arg6[%c0_12, %c0_13] : memref<128x256xbf16, #tpu.memory_space<vmem>>, vector<128x256xbf16>
    %cst_14 = arith.constant dense<0.000000e+00> : vector<128x256xf32>
    %18 = tpu.matmul %16, %17, %cst_14 {dimension_numbers = #tpu.dot_dimension_numbers<[1], [0], [0], [1], [0, 0, 1, 1], [], []>} : vector<128x128xbf16>, vector<128x256xbf16>, vector<128x256xf32> -> vector<128x256xf32>
    %c0_15 = arith.constant 0 : index
    %c0_16 = arith.constant 0 : index
    %19 = vector.load %arg7[%c0_15, %c0_16] : memref<1x256xf32, #tpu.memory_space<vmem>>, vector<1x256xf32>
    %20 = vector.broadcast %19 : vector<1x256xf32> to vector<128x256xf32>
    %21 = arith.addf %18, %20 : vector<128x256xf32>
    %cst_17 = arith.constant 0.000000e+00 : f32
    %22 = vector.broadcast %cst_17 : f32 to vector<128x256xf32>
    %23 = arith.maximumf %21, %22 : vector<128x256xf32>
    %24 = arith.truncf %23 : vector<128x256xf32> to vector<128x256xbf16>
    %c0_18 = arith.constant 0 : index
    %c0_19 = arith.constant 0 : index
    %25 = vector.load %arg8[%c0_18, %c0_19] : memref<256x128xbf16, #tpu.memory_space<vmem>>, vector<256x128xbf16>
    %cst_20 = arith.constant dense<0.000000e+00> : vector<128x128xf32>
    %26 = tpu.matmul %24, %25, %cst_20 {dimension_numbers = #tpu.dot_dimension_numbers<[1], [0], [0], [1], [0, 0, 1, 1], [], []>} : vector<128x256xbf16>, vector<256x128xbf16>, vector<128x128xf32> -> vector<128x128xf32>
    %c0_21 = arith.constant 0 : index
    %c0_22 = arith.constant 0 : index
    %27 = vector.load %arg9[%c0_21, %c0_22] : memref<1x128xf32, #tpu.memory_space<vmem>>, vector<1x128xf32>
    %28 = vector.broadcast %27 : vector<1x128xf32> to vector<128x128xf32>
    %29 = arith.addf %26, %28 : vector<128x128xf32>
    %30 = vector.extract_strided_slice %29 {offsets = [0, 0], sizes = [128, 1], strides = [1, 1]} : vector<128x128xf32> to vector<128x1xf32>
    %31 = vector.extract_strided_slice %29 {offsets = [0, 1], sizes = [128, 4], strides = [1, 1]} : vector<128x128xf32> to vector<128x4xf32>
    %cst_23 = arith.constant dense<0.000000e+00> : vector<128xf32>
    %32 = vector.multi_reduction <add>, %31, %cst_23 [1] : vector<128x4xf32> to vector<128xf32>
    %33 = vector.shape_cast %32 : vector<128xf32> to vector<128x1xf32>
    %cst_24 = arith.constant 4.000000e+00 : f32
    %34 = vector.broadcast %cst_24 : f32 to vector<128x1xf32>
    %35 = arith.divf %33, %34 : vector<128x1xf32>
    %36 = arith.subf %30, %35 : vector<128x1xf32>
    %37 = vector.broadcast %36 : vector<128x1xf32> to vector<128x128xf32>
    %38 = arith.addf %29, %37 : vector<128x128xf32>
    %c0_25 = arith.constant 0 : index
    %c0_26 = arith.constant 0 : index
    %39 = vector.load %arg10[%c0_25, %c0_26] : memref<128x128xf32, #tpu.memory_space<vmem>>, vector<128x128xf32>
    tpu.vector_store %arg10[%c0_25, %c0_26], %38 {strides = array<i32>} : memref<128x128xf32, #tpu.memory_space<vmem>>, vector<128x128xf32>,
    return
  }
  func.func @transform_0(%arg0: i32) -> (i32, i32) {
    %c0_i32 = arith.constant 0 : i32
    %c0_i32_0 = arith.constant 0 : i32
    return %arg0, %c0_i32 : i32, i32
  }
  func.func @transform_1(%arg0: i32) -> (i32, i32) {
    %c0_i32 = arith.constant 0 : i32
    %c0_i32_0 = arith.constant 0 : i32
    %c0_i32_1 = arith.constant 0 : i32
    return %c0_i32, %c0_i32_0 : i32, i32
  }
  func.func @transform_2(%arg0: i32) -> (i32, i32) {
    %c0_i32 = arith.constant 0 : i32
    %c0_i32_0 = arith.constant 0 : i32
    %c0_i32_1 = arith.constant 0 : i32
    return %c0_i32, %c0_i32_0 : i32, i32
  }
  func.func @transform_3(%arg0: i32) -> (i32, i32) {
    %c0_i32 = arith.constant 0 : i32
    %c0_i32_0 = arith.constant 0 : i32
    %c0_i32_1 = arith.constant 0 : i32
    return %c0_i32, %c0_i32_0 : i32, i32
  }
  func.func @transform_4(%arg0: i32) -> (i32, i32) {
    %c0_i32 = arith.constant 0 : i32
    %c0_i32_0 = arith.constant 0 : i32
    %c0_i32_1 = arith.constant 0 : i32
    return %c0_i32, %c0_i32_0 : i32, i32
  }
  func.func @transform_5(%arg0: i32) -> (i32, i32) {
    %c0_i32 = arith.constant 0 : i32
    %c0_i32_0 = arith.constant 0 : i32
    %c0_i32_1 = arith.constant 0 : i32
    return %c0_i32, %c0_i32_0 : i32, i32
  }
  func.func @transform_6(%arg0: i32) -> (i32, i32) {
    %c0_i32 = arith.constant 0 : i32
    %c0_i32_0 = arith.constant 0 : i32
    %c0_i32_1 = arith.constant 0 : i32
    return %c0_i32, %c0_i32_0 : i32, i32
  }
  func.func @transform_7(%arg0: i32) -> (i32, i32) {
    %c0_i32 = arith.constant 0 : i32
    %c0_i32_0 = arith.constant 0 : i32
    %c0_i32_1 = arith.constant 0 : i32
    return %c0_i32, %c0_i32_0 : i32, i32
  }
  func.func @transform_8(%arg0: i32) -> (i32, i32) {
    %c0_i32 = arith.constant 0 : i32
    %c0_i32_0 = arith.constant 0 : i32
    %c0_i32_1 = arith.constant 0 : i32
    return %c0_i32, %c0_i32_0 : i32, i32
  }
  func.func @transform_9(%arg0: i32) -> (i32, i32) {
    %c0_i32 = arith.constant 0 : i32
    %c0_i32_0 = arith.constant 0 : i32
    return %arg0, %c0_i32 : i32, i32
  }
}

</mosaic_0001>

<llo_original>
// kernel: tpu_custom_call.1
$region0: #{tpu_custom_call.1}
  #allocation0 [shape = 'u32[]', space=smem, size = 0x4, offset = 0x4, fixed_abs, tag = 'smem constant byte address 0x4 - core index']
  #allocation1 [shape = 'u32[144,128]{1,0:T(1,128)}', space=vmem, size = 0x12000, scoped, tag = 'internal scratch']
  %s0 = inlined_call_operand.hbm [shape: bf16[128,128], index: 0, kind: input, shape index: {}]
  %s1 = inlined_call_operand.hbm [shape: bf16[128,128], index: 1, kind: input, shape index: {}]
  %s2 = inlined_call_operand.vmem [shape: f32[1,128], index: 2, kind: input, shape index: {}]
  %s3 = inlined_call_operand.hbm [shape: bf16[128,128], index: 3, kind: input, shape index: {}]
  %s4 = inlined_call_operand.vmem [shape: f32[1,128], index: 4, kind: input, shape index: {}]
  %s5 = inlined_call_operand.hbm [shape: bf16[128,256], index: 5, kind: input, shape index: {}]
  %s6 = inlined_call_operand.vmem [shape: f32[1,256], index: 6, kind: input, shape index: {}]
  %s7 = inlined_call_operand.hbm [shape: bf16[256,128], index: 7, kind: input, shape index: {}]
  %s8 = inlined_call_operand.vmem [shape: f32[1,128], index: 8, kind: input, shape index: {}]
  %s9 = inlined_call_operand.hbm [shape: f32[128,128], index: 9, kind: output, shape index: {}]
  %s10 = sld [smem:[#allocation0]]
  $region66: #{tpu_custom_call.1} parent=0
    _
  %s12 = ssub.s32 1, %s10
  %s13 = scalar_select 0, %s12, %s10
  $region1: #{tpu_custom_call.1} parent=0
    #allocation2 [shape = 'u8[32768]{0}', space=vmem, size = 0x8000, scoped, tag = 'input window, operand 0, single buffered']
    #allocation3 [shape = 's32[1]{0}', space=sflag, size = 0x4, scoped, tag = 'scoped memory for tpu_custom_call.1']
    #allocation4 [shape = 's32[1]{0}', space=sflag, size = 0x4, scoped, tag = 'scoped memory for tpu_custom_call.1']
    #allocation5 [shape = 'u8[32768]{0}', space=vmem, size = 0x8000, scoped, tag = 'input window, operand 1, single buffered']
    #allocation6 [shape = 's32[1]{0}', space=sflag, size = 0x4, scoped, tag = 'scoped memory for tpu_custom_call.1']
    #allocation7 [shape = 'u8[32768]{0}', space=vmem, size = 0x8000, scoped, tag = 'input window, operand 3, single buffered']
    #allocation8 [shape = 'u8[65536]{0}', space=vmem, size = 0x10000, scoped, tag = 'input window, operand 5, single buffered']
    #allocation9 [shape = 's32[1]{0}', space=sflag, size = 0x4, scoped, tag = 'scoped memory for tpu_custom_call.1']
    #allocation10 [shape = 'u8[65536]{0}', space=vmem, size = 0x10000, scoped, tag = 'input window, operand 7, single buffered']
    #allocation11 [shape = 'u8[65536]{0}', space=vmem, size = 0x10000, scoped, tag = 'output window, operand 0, single buffered']
    %14 = vsyncpa [#allocation3], 0
    %15 = vsyncpa [#allocation6], 0
    %16 = vsyncpa [#allocation9], 0
    %17 = vsyncpa [#allocation4], 0
    // Predicated region
    $region2: #{tpu_custom_call.1} parent=1 // pred_check
      _
    $region3: #{tpu_custom_call.1} parent=1 // pred_check_branch
      %19 = sbr.rel (0) target = $region5
    $region4: #{tpu_custom_call.1} parent=1 // pred_region
      %s21 = ssub.s32 1024, 1024
      %22 = vsyncadd [#allocation3], %s21
      %s23 = sshll.u32 [#allocation2], 4
      %s24 = int_to_ptr.vmem [resolvable:$true] %s23
      %29 = dma.hbm_to_vmem [thread:$0]  %s0, 1024, %s24, [#allocation3], 64, 64, 4
    $region5: #{tpu_custom_call.1} parent=1 // pred_fallthru
      _
    // Predicated region
    $region6: #{tpu_custom_call.1} parent=1 // pred_check
      _
    $region7: #{tpu_custom_call.1} parent=1 // pred_check_branch
      %31 = sbr.rel (0) target = $region9
    $region8: #{tpu_custom_call.1} parent=1 // pred_region
      %s33 = ssub.s32 1024, 1024
      %34 = vsyncadd [#allocation6], %s33
      %s35 = sshll.u32 [#allocation5], 4
      %s36 = int_to_ptr.vmem [resolvable:$true] %s35
      %41 = dma.hbm_to_vmem [thread:$0]  %s1, 1024, %s36, [#allocation6], 64, 64, 4
    $region9: #{tpu_custom_call.1} parent=1 // pred_fallthru
      _
    // Predicated region
    $region10: #{tpu_custom_call.1} parent=1 // pred_check
      _
    $region11: #{tpu_custom_call.1} parent=1 // pred_check_branch
      %43 = sbr.rel (0) target = $region13
    $region12: #{tpu_custom_call.1} parent=1 // pred_region
      _
    $region13: #{tpu_custom_call.1} parent=1 // pred_fallthru
      _
    // Predicated region
    $region14: #{tpu_custom_call.1} parent=1 // pred_check
      _
    $region15: #{tpu_custom_call.1} parent=1 // pred_check_branch
      %45 = sbr.rel (0) target = $region17
    $region16: #{tpu_custom_call.1} parent=1 // pred_region
      %s47 = ssub.s32 1024, 1024
      %48 = vsyncadd [#allocation6], %s47
      %s49 = sshll.u32 [#allocation7], 4
      %s50 = int_to_ptr.vmem [resolvable:$true] %s49
      %55 = dma.hbm_to_vmem [thread:$0]  %s3, 1024, %s50, [#allocation6], 64, 64, 4
    $region17: #{tpu_custom_call.1} parent=1 // pred_fallthru
      _
    // Predicated region
    $region18: #{tpu_custom_call.1} parent=1 // pred_check
      _
    $region19: #{tpu_custom_call.1} parent=1 // pred_check_branch
      %57 = sbr.rel (0) target = $region21
    $region20: #{tpu_custom_call.1} parent=1 // pred_region
      _
    $region21: #{tpu_custom_call.1} parent=1 // pred_fallthru
      _
    // Predicated region
    $region22: #{tpu_custom_call.1} parent=1 // pred_check
      _
    $region23: #{tpu_custom_call.1} parent=1 // pred_check_branch
      %59 = sbr.rel (0) target = $region25
    $region24: #{tpu_custom_call.1} parent=1 // pred_region
      %s61 = ssub.s32 2048, 2048
      %62 = vsyncadd [#allocation9], %s61
      %s63 = sshll.u32 [#allocation8], 4
      %s64 = int_to_ptr.vmem [resolvable:$true] %s63
      %69 = dma.hbm_to_vmem [thread:$0]  %s5, 2048, %s64, [#allocation9], 128, 128, 8
    $region25: #{tpu_custom_call.1} parent=1 // pred_fallthru
      _
    // Predicated region
    $region26: #{tpu_custom_call.1} parent=1 // pred_check
      _
    $region27: #{tpu_custom_call.1} parent=1 // pred_check_branch
      %71 = sbr.rel (0) target = $region29
    $region28: #{tpu_custom_call.1} parent=1 // pred_region
      _
    $region29: #{tpu_custom_call.1} parent=1 // pred_fallthru
      _
    // Predicated region
    $region30: #{tpu_custom_call.1} parent=1 // pred_check
      _
    $region31: #{tpu_custom_call.1} parent=1 // pred_check_branch
      %73 = sbr.rel (0) target = $region33
    $region32: #{tpu_custom_call.1} parent=1 // pred_region
      %s75 = ssub.s32 2048, 2048
      %76 = vsyncadd [#allocation9], %s75
      %s77 = sshll.u32 [#allocation10], 4
      %s78 = int_to_ptr.vmem [resolvable:$true] %s77
      %83 = dma.hbm_to_vmem [thread:$0]  %s7, 2048, %s78, [#allocation9], 64, 64, 4
    $region33: #{tpu_custom_call.1} parent=1 // pred_fallthru
      _
    // Predicated region
    $region34: #{tpu_custom_call.1} parent=1 // pred_check
      _
    $region35: #{tpu_custom_call.1} parent=1 // pred_check_branch
      %85 = sbr.rel (0) target = $region37
    $region36: #{tpu_custom_call.1} parent=1 // pred_region
      _
    $region37: #{tpu_custom_call.1} parent=1 // pred_fallthru
      _
    // Predicated region
    $region38: #{tpu_custom_call.1} parent=1 // pred_check
      _
    $region39: #{tpu_custom_call.1} parent=1 // pred_check_branch
      %87 = sbr.rel (0) target = $region41
    $region40: #{tpu_custom_call.1} parent=1 // pred_region
      %88 = dma.done [#allocation3], 1024
    $region41: #{tpu_custom_call.1} parent=1 // pred_fallthru
      _
    // Predicated region
    $region42: #{tpu_custom_call.1} parent=1 // pred_check
      _
    $region43: #{tpu_custom_call.1} parent=1 // pred_check_branch
      %90 = sbr.rel (0) target = $region45
    $region44: #{tpu_custom_call.1} parent=1 // pred_region
      %91 = dma.done [#allocation6], 1024
    $region45: #{tpu_custom_call.1} parent=1 // pred_fallthru
      _
    // Predicated region
    $region46: #{tpu_custom_call.1} parent=1 // pred_check
      _
    $region47: #{tpu_custom_call.1} parent=1 // pred_check_branch
      %93 = sbr.rel (0) target = $region49
    $region48: #{tpu_custom_call.1} parent=1 // pred_region
      %94 = dma.done [#allocation6], 1024
    $region49: #{tpu_custom_call.1} parent=1 // pred_fallthru
      _
    // Predicated region
    $region50: #{tpu_custom_call.1} parent=1 // pred_check
      _
    $region51: #{tpu_custom_call.1} parent=1 // pred_check_branch
      %96 = sbr.rel (0) target = $region53
    $region52: #{tpu_custom_call.1} parent=1 // pred_region
      %97 = dma.done [#allocation9], 2048
    $region53: #{tpu_custom_call.1} parent=1 // pred_fallthru
      _
    // Predicated region
    $region54: #{tpu_custom_call.1} parent=1 // pred_check
      _
    $region55: #{tpu_custom_call.1} parent=1 // pred_check_branch
      %99 = sbr.rel (0) target = $region57
    $region56: #{tpu_custom_call.1} parent=1 // pred_region
      %100 = dma.done [#allocation9], 2048
    $region57: #{tpu_custom_call.1} parent=1 // pred_fallthru
      _
    %v102 = vld [vmem:[#allocation2] sm:$0xf]
    %v103 = vld [vmem:[#allocation2 + $0x4] sm:$0xf]
    %v104 = vld [vmem:[#allocation2 + $0x8] sm:$0xf]
    %v105 = vld [vmem:[#allocation2 + $0xc] sm:$0xf]
    %v106 = vld [vmem:[#allocation2 + $0x10] sm:$0xf]
    %v107 = vld [vmem:[#allocation2 + $0x14] sm:$0xf]
    %v108 = vld [vmem:[#allocation2 + $0x18] sm:$0xf]
    %v109 = vld [vmem:[#allocation2 + $0x1c] sm:$0xf]
    %v110 = vld [vmem:[#allocation2 + $0x20] sm:$0xf]
    %v111 = vld [vmem:[#allocation2 + $0x24] sm:$0xf]
    %v112 = vld [vmem:[#allocation2 + $0x28] sm:$0xf]
    %v113 = vld [vmem:[#allocation2 + $0x2c] sm:$0xf]
    %v114 = vld [vmem:[#allocation2 + $0x30] sm:$0xf]
    %v115 = vld [vmem:[#allocation2 + $0x34] sm:$0xf]
    %v116 = vld [vmem:[#allocation2 + $0x38] sm:$0xf]
    %v117 = vld [vmem:[#allocation2 + $0x3c] sm:$0xf]
    %v118 = vld [vmem:[#allocation5] sm:$0xf]
    %v119 = vld [vmem:[#allocation5 + $0x4] sm:$0xf]
    %v120 = vld [vmem:[#allocation5 + $0x8] sm:$0xf]
    %v121 = vld [vmem:[#allocation5 + $0xc] sm:$0xf]
    %v122 = vld [vmem:[#allocation5 + $0x10] sm:$0xf]
    %v123 = vld [vmem:[#allocation5 + $0x14] sm:$0xf]
    %v124 = vld [vmem:[#allocation5 + $0x18] sm:$0xf]
    %v125 = vld [vmem:[#allocation5 + $0x1c] sm:$0xf]
    %v126 = vld [vmem:[#allocation5 + $0x20] sm:$0xf]
    %v127 = vld [vmem:[#allocation5 + $0x24] sm:$0xf]
    %v128 = vld [vmem:[#allocation5 + $0x28] sm:$0xf]
    %v129 = vld [vmem:[#allocation5 + $0x2c] sm:$0xf]
    %v130 = vld [vmem:[#allocation5 + $0x30] sm:$0xf]
    %v131 = vld [vmem:[#allocation5 + $0x34] sm:$0xf]
    %v132 = vld [vmem:[#allocation5 + $0x38] sm:$0xf]
    %v133 = vld [vmem:[#allocation5 + $0x3c] sm:$0xf]
    %v134 = vld [vmem:[%s2] sm:$0x1]
    %v136 = vlaneseq
    %v137 = vshrl.u32 %v136, 7
    %v138 = vsub.s32 0, %v137
    %v139 = vrot.slane %v134, %v138
    %v157 = vunpack.c.l.b16 %v102
    %v158 = vunpack.c.l.b16 %v103
    %v159 = vunpack.c.l.b16 %v104
    %v160 = vunpack.c.l.b16 %v105
    %v161 = vunpack.c.l.b16 %v106
    %v162 = vunpack.c.l.b16 %v107
    %v163 = vunpack.c.l.b16 %v108
    %v164 = vunpack.c.l.b16 %v109
    %v165 = vunpack.c.l.b16 %v110
    %v166 = vunpack.c.l.b16 %v111
    %v167 = vunpack.c.l.b16 %v112
    %v168 = vunpack.c.l.b16 %v113
    %v169 = vunpack.c.l.b16 %v114
    %v170 = vunpack.c.l.b16 %v115
    %v171 = vunpack.c.l.b16 %v116
    %v172 = vunpack.c.l.b16 %v117
    %v173 = vpack.c.b16 %v158, %v157
    %v174 = vpack.c.b16 %v160, %v159
    %v175 = vpack.c.b16 %v162, %v161
    %v176 = vpack.c.b16 %v164, %v163
    %v177 = vpack.c.b16 %v166, %v165
    %v178 = vpack.c.b16 %v168, %v167
    %v179 = vpack.c.b16 %v170, %v169
    %v180 = vpack.c.b16 %v172, %v171
    %v205 = vunpack.c.l.b16 %v118
    %v206 = vunpack.c.l.b16 %v119
    %v207 = vunpack.c.l.b16 %v120
    %v208 = vunpack.c.l.b16 %v121
    %v209 = vunpack.c.l.b16 %v122
    %v210 = vunpack.c.l.b16 %v123
    %v211 = vunpack.c.l.b16 %v124
    %v212 = vunpack.c.l.b16 %v125
    %v213 = vunpack.c.l.b16 %v126
    %v214 = vunpack.c.l.b16 %v127
    %v215 = vunpack.c.l.b16 %v128
    %v216 = vunpack.c.l.b16 %v129
    %v217 = vunpack.c.l.b16 %v130
    %v218 = vunpack.c.l.b16 %v131
    %v219 = vunpack.c.l.b16 %v132
    %v220 = vunpack.c.l.b16 %v133
    %v221 = vpack.c.b16 %v206, %v205
    %v222 = vpack.c.b16 %v208, %v207
    %v223 = vpack.c.b16 %v210, %v209
    %v224 = vpack.c.b16 %v212, %v211
    %v225 = vpack.c.b16 %v214, %v213
    %v226 = vpack.c.b16 %v216, %v215
    %v227 = vpack.c.b16 %v218, %v217
    %v228 = vpack.c.b16 %v220, %v219
    %237 = vmatprep.subr.bf16.mxu0 0
    %238 = vmatpush1.bf16.msra.mxu0 %v221
    %239 = vmatprep.subr.bf16.mxu0 0
    %240 = vmatpush1.bf16.msra.mxu0 %v222
    %241 = vmatprep.subr.bf16.mxu0 0
    %242 = vmatpush1.bf16.msra.mxu0 %v223
    %243 = vmatprep.subr.bf16.mxu0 0
    %244 = vmatpush1.bf16.msra.mxu0 %v224
    %245 = vmatprep.subr.bf16.mxu0 0
    %246 = vmatpush1.bf16.msra.mxu0 %v225
    %247 = vmatprep.subr.bf16.mxu0 0
    %248 = vmatpush1.bf16.msra.mxu0 %v226
    %249 = vmatprep.subr.bf16.mxu0 0
    %250 = vmatpush1.bf16.msra.mxu0 %v227
    %251 = vmatprep.subr.bf16.mxu0 0
    %252 = vmatpush1.bf16.msra.mxu0 %v228
    %253 = vmatprep.subr.bf16.mxu0 0
    %254 = vmatpush1.bf16.msra.mxu0 0
    %255 = vmatprep.subr.bf16.mxu0 0
    %256 = vmatpush1.bf16.msra.mxu0 0
    %257 = vmatprep.subr.bf16.mxu0 0
    %258 = vmatpush1.bf16.msra.mxu0 0
    %259 = vmatprep.subr.bf16.mxu0 0
    %260 = vmatpush1.bf16.msra.mxu0 0
    %261 = vmatprep.subr.bf16.mxu0 0
    %262 = vmatpush1.bf16.msra.mxu0 0
    %263 = vmatprep.subr.bf16.mxu0 0
    %264 = vmatpush1.bf16.msra.mxu0 0
    %265 = vmatprep.subr.bf16.mxu0 0
    %266 = vmatpush1.bf16.msra.mxu0 0
    %267 = vmatprep.subr.bf16.mxu0 0
    %268 = vmatpush1.bf16.msra.mxu0 0
    %269 = vmatprep.mubr.bf16.mxu0 0
    %270 = vmatmul.mubr.bf16.gmra.mrb[0].mxu0 %v173
    %v271 = vpop.f32.mrb[0].mxu0
    %v272 = vadd.f32 %v139, %v271
    %v273 = vpop.f32.mrb[0].mxu0
    %v274 = vpop.f32.mrb[0].mxu0
    %v275 = vadd.f32 %v139, %v274
    %v276 = vpop.f32.mrb[0].mxu0
    %277 = vmatprep.mubr.bf16.mxu0 0
    %278 = vmatmul.mubr.bf16.gmra.mrb[0].mxu0 %v174
    %v279 = vpop.f32.mrb[0].mxu0
    %v280 = vadd.f32 %v139, %v279
    %v281 = vpop.f32.mrb[0].mxu0
    %v282 = vpop.f32.mrb[0].mxu0
    %v283 = vadd.f32 %v139, %v282
    %v284 = vpop.f32.mrb[0].mxu0
    %285 = vmatprep.mubr.bf16.mxu0 0
    %286 = vmatmul.mubr.bf16.gmra.mrb[0].mxu0 %v175
    %v287 = vpop.f32.mrb[0].mxu0
    %v288 = vadd.f32 %v139, %v287
    %v289 = vpop.f32.mrb[0].mxu0
    %v290 = vpop.f32.mrb[0].mxu0
    %v291 = vadd.f32 %v139, %v290
    %v292 = vpop.f32.mrb[0].mxu0
    %293 = vmatprep.mubr.bf16.mxu0 0
    %294 = vmatmul.mubr.bf16.gmra.mrb[0].mxu0 %v176
    %v295 = vpop.f32.mrb[0].mxu0
    %v296 = vadd.f32 %v139, %v295
    %v297 = vpop.f32.mrb[0].mxu0
    %v298 = vpop.f32.mrb[0].mxu0
    %v299 = vadd.f32 %v139, %v298
    %v300 = vpop.f32.mrb[0].mxu0
    %301 = vmatprep.mubr.bf16.mxu0 0
    %302 = vmatmul.mubr.bf16.gmra.mrb[0].mxu0 %v177
    %v303 = vpop.f32.mrb[0].mxu0
    %v304 = vadd.f32 %v139, %v303
    %v305 = vpop.f32.mrb[0].mxu0
    %v306 = vpop.f32.mrb[0].mxu0
    %v307 = vadd.f32 %v139, %v306
    %v308 = vpop.f32.mrb[0].mxu0
    %309 = vmatprep.mubr.bf16.mxu0 0
    %310 = vmatmul.mubr.bf16.gmra.mrb[0].mxu0 %v178
    %v311 = vpop.f32.mrb[0].mxu0
    %v312 = vadd.f32 %v139, %v311
    %v313 = vpop.f32.mrb[0].mxu0
    %v314 = vpop.f32.mrb[0].mxu0
    %v315 = vadd.f32 %v139, %v314
    %v316 = vpop.f32.mrb[0].mxu0
    %317 = vmatprep.mubr.bf16.mxu0 0
    %318 = vmatmul.mubr.bf16.gmra.mrb[0].mxu0 %v179
    %v319 = vpop.f32.mrb[0].mxu0
    %v320 = vadd.f32 %v139, %v319
    %v321 = vpop.f32.mrb[0].mxu0
    %v322 = vpop.f32.mrb[0].mxu0
    %v323 = vadd.f32 %v139, %v322
    %v324 = vpop.f32.mrb[0].mxu0
    %325 = vmatprep.mubr.bf16.mxu0 0
    %326 = vmatmul.mubr.bf16.gmra.mrb[0].mxu0 %v180
    %v327 = vpop.f32.mrb[0].mxu0
    %v328 = vadd.f32 %v139, %v327
    %v329 = vpop.f32.mrb[0].mxu0
    %v330 = vpop.f32.mrb[0].mxu0
    %v331 = vadd.f32 %v139, %v330
    %v332 = vpop.f32.mrb[0].mxu0
    %333 = vdwg.mxu0
    %v334 = vmax.f32 %v272, 0.0
    %v335 = vmax.f32 %v275, 0.0
    %v336 = vmax.f32 %v280, 0.0
    %v337 = vmax.f32 %v283, 0.0
    %v338 = vmax.f32 %v288, 0.0
    %v339 = vmax.f32 %v291, 0.0
    %v340 = vmax.f32 %v296, 0.0
    %v341 = vmax.f32 %v299, 0.0
    %v342 = vmax.f32 %v304, 0.0
    %v343 = vmax.f32 %v307, 0.0
    %v344 = vmax.f32 %v312, 0.0
    %v345 = vmax.f32 %v315, 0.0
    %v346 = vmax.f32 %v320, 0.0
    %v347 = vmax.f32 %v323, 0.0
    %v348 = vmax.f32 %v328, 0.0
    %v349 = vmax.f32 %v331, 0.0
    %v350 = vpack.c.bf16 %v335, %v334
    %v351 = vpack.c.bf16 %v337, %v336
    %v352 = vpack.c.bf16 %v339, %v338
    %v353 = vpack.c.bf16 %v341, %v340
    %v354 = vpack.c.bf16 %v343, %v342
    %v355 = vpack.c.bf16 %v345, %v344
    %v356 = vpack.c.bf16 %v347, %v346
    %v357 = vpack.c.bf16 %v349, %v348
    %v358 = vld [vmem:[#allocation7] sm:$0xf]
    %v359 = vld [vmem:[#allocation7 + $0x4] sm:$0xf]
    %v360 = vld [vmem:[#allocation7 + $0x8] sm:$0xf]
    %v361 = vld [vmem:[#allocation7 + $0xc] sm:$0xf]
    %v362 = vld [vmem:[#allocation7 + $0x10] sm:$0xf]
    %v363 = vld [vmem:[#allocation7 + $0x14] sm:$0xf]
    %v364 = vld [vmem:[#allocation7 + $0x18] sm:$0xf]
    %v365 = vld [vmem:[#allocation7 + $0x1c] sm:$0xf]
    %v366 = vld [vmem:[#allocation7 + $0x20] sm:$0xf]
    %v367 = vld [vmem:[#allocation7 + $0x24] sm:$0xf]
    %v368 = vld [vmem:[#allocation7 + $0x28] sm:$0xf]
    %v369 = vld [vmem:[#allocation7 + $0x2c] sm:$0xf]
    %v370 = vld [vmem:[#allocation7 + $0x30] sm:$0xf]
    %v371 = vld [vmem:[#allocation7 + $0x34] sm:$0xf]
    %v372 = vld [vmem:[#allocation7 + $0x38] sm:$0xf]
    %v373 = vld [vmem:[#allocation7 + $0x3c] sm:$0xf]
    %v374 = vld [vmem:[%s4] sm:$0x1]
    %v376 = vlaneseq
    %v377 = vshrl.u32 %v376, 7
    %v378 = vsub.s32 0, %v377
    %v379 = vrot.slane %v374, %v378
    %v397 = vunpack.c.l.b16 %v358
    %v398 = vunpack.c.l.b16 %v359
    %v399 = vunpack.c.l.b16 %v360
    %v400 = vunpack.c.l.b16 %v361
    %v401 = vunpack.c.l.b16 %v362
    %v402 = vunpack.c.l.b16 %v363
    %v403 = vunpack.c.l.b16 %v364
    %v404 = vunpack.c.l.b16 %v365
    %v405 = vunpack.c.l.b16 %v366
    %v406 = vunpack.c.l.b16 %v367
    %v407 = vunpack.c.l.b16 %v368
    %v408 = vunpack.c.l.b16 %v369
    %v409 = vunpack.c.l.b16 %v370
    %v410 = vunpack.c.l.b16 %v371
    %v411 = vunpack.c.l.b16 %v372
    %v412 = vunpack.c.l.b16 %v373
    %v413 = vpack.c.b16 %v398, %v397
    %v414 = vpack.c.b16 %v400, %v399
    %v415 = vpack.c.b16 %v402, %v401
    %v416 = vpack.c.b16 %v404, %v403
    %v417 = vpack.c.b16 %v406, %v405
    %v418 = vpack.c.b16 %v408, %v407
    %v419 = vpack.c.b16 %v410, %v409
    %v420 = vpack.c.b16 %v412, %v411
    %429 = vmatprep.subr.bf16.mxu0 0
    %430 = vmatpush1.bf16.msra.mxu0 %v413
    %431 = vmatprep.subr.bf16.mxu0 0
    %432 = vmatpush1.bf16.msra.mxu0 %v414
    %433 = vmatprep.subr.bf16.mxu0 0
    %434 = vmatpush1.bf16.msra.mxu0 %v415
    %435 = vmatprep.subr.bf16.mxu0 0
    %436 = vmatpush1.bf16.msra.mxu0 %v416
    %437 = vmatprep.subr.bf16.mxu0 0
    %438 = vmatpush1.bf16.msra.mxu0 %v417
    %439 = vmatprep.subr.bf16.mxu0 0
    %440 = vmatpush1.bf16.msra.mxu0 %v418
    %441 = vmatprep.subr.bf16.mxu0 0
    %442 = vmatpush1.bf16.msra.mxu0 %v419
    %443 = vmatprep.subr.bf16.mxu0 0
    %444 = vmatpush1.bf16.msra.mxu0 %v420
    %445 = vmatprep.subr.bf16.mxu0 0
    %446 = vmatpush1.bf16.msra.mxu0 0
    %447 = vmatprep.subr.bf16.mxu0 0
    %448 = vmatpush1.bf16.msra.mxu0 0
    %449 = vmatprep.subr.bf16.mxu0 0
    %450 = vmatpush1.bf16.msra.mxu0 0
    %451 = vmatprep.subr.bf16.mxu0 0
    %452 = vmatpush1.bf16.msra.mxu0 0
    %453 = vmatprep.subr.bf16.mxu0 0
    %454 = vmatpush1.bf16.msra.mxu0 0
    %455 = vmatprep.subr.bf16.mxu0 0
    %456 = vmatpush1.bf16.msra.mxu0 0
    %457 = vmatprep.subr.bf16.mxu0 0
    %458 = vmatpush1.bf16.msra.mxu0 0
    %459 = vmatprep.subr.bf16.mxu0 0
    %460 = vmatpush1.bf16.msra.mxu0 0
    %461 = vmatprep.mubr.bf16.mxu0 0
    %462 = vmatmul.mubr.bf16.gmra.mrb[0].mxu0 %v350
    %v463 = vpop.f32.mrb[0].mxu0
    %v464 = vadd.f32 %v379, %v463
    %v465 = vpop.f32.mrb[0].mxu0
    %v466 = vpop.f32.mrb[0].mxu0
    %v467 = vadd.f32 %v379, %v466
    %v468 = vpop.f32.mrb[0].mxu0
    %469 = vmatprep.mubr.bf16.mxu0 0
    %470 = vmatmul.mubr.bf16.gmra.mrb[0].mxu0 %v351
    %v471 = vpop.f32.mrb[0].mxu0
    %v472 = vadd.f32 %v379, %v471
    %v473 = vpop.f32.mrb[0].mxu0
    %v474 = vpop.f32.mrb[0].mxu0
    %v475 = vadd.f32 %v379, %v474
    %v476 = vpop.f32.mrb[0].mxu0
    %477 = vmatprep.mubr.bf16.mxu0 0
    %478 = vmatmul.mubr.bf16.gmra.mrb[0].mxu0 %v352
    %v479 = vpop.f32.mrb[0].mxu0
    %v480 = vadd.f32 %v379, %v479
    %v481 = vpop.f32.mrb[0].mxu0
    %v482 = vpop.f32.mrb[0].mxu0
    %v483 = vadd.f32 %v379, %v482
    %v484 = vpop.f32.mrb[0].mxu0
    %485 = vmatprep.mubr.bf16.mxu0 0
    %486 = vmatmul.mubr.bf16.gmra.mrb[0].mxu0 %v353
    %v487 = vpop.f32.mrb[0].mxu0
    %v488 = vadd.f32 %v379, %v487
    %v489 = vpop.f32.mrb[0].mxu0
    %v490 = vpop.f32.mrb[0].mxu0
    %v491 = vadd.f32 %v379, %v490
    %v492 = vpop.f32.mrb[0].mxu0
    %493 = vmatprep.mubr.bf16.mxu0 0
    %494 = vmatmul.mubr.bf16.gmra.mrb[0].mxu0 %v354
    %v495 = vpop.f32.mrb[0].mxu0
    %v496 = vadd.f32 %v379, %v495
    %v497 = vpop.f32.mrb[0].mxu0
    %v498 = vpop.f32.mrb[0].mxu0
    %v499 = vadd.f32 %v379, %v498
    %v500 = vpop.f32.mrb[0].mxu0
    %501 = vmatprep.mubr.bf16.mxu0 0
    %502 = vmatmul.mubr.bf16.gmra.mrb[0].mxu0 %v355
    %v503 = vpop.f32.mrb[0].mxu0
    %v504 = vadd.f32 %v379, %v503
    %v505 = vpop.f32.mrb[0].mxu0
    %v506 = vpop.f32.mrb[0].mxu0
    %v507 = vadd.f32 %v379, %v506
    %v508 = vpop.f32.mrb[0].mxu0
    %509 = vmatprep.mubr.bf16.mxu0 0
    %510 = vmatmul.mubr.bf16.gmra.mrb[0].mxu0 %v356
    %v511 = vpop.f32.mrb[0].mxu0
    %v512 = vadd.f32 %v379, %v511
    %v513 = vpop.f32.mrb[0].mxu0
    %v514 = vpop.f32.mrb[0].mxu0
    %v515 = vadd.f32 %v379, %v514
    %v516 = vpop.f32.mrb[0].mxu0
    %517 = vmatprep.mubr.bf16.mxu0 0
    %518 = vmatmul.mubr.bf16.gmra.mrb[0].mxu0 %v357
    %v519 = vpop.f32.mrb[0].mxu0
    %v520 = vadd.f32 %v379, %v519
    %v521 = vpop.f32.mrb[0].mxu0
    %v522 = vpop.f32.mrb[0].mxu0
    %v523 = vadd.f32 %v379, %v522
    %v524 = vpop.f32.mrb[0].mxu0
    %525 = vdwg.mxu0
    %v526 = vmax.f32 %v464, 0.0
    %v527 = vmax.f32 %v467, 0.0
    %v528 = vmax.f32 %v472, 0.0
    %v529 = vmax.f32 %v475, 0.0
    %v530 = vmax.f32 %v480, 0.0
    %v531 = vmax.f32 %v483, 0.0
    %v532 = vmax.f32 %v488, 0.0
    %v533 = vmax.f32 %v491, 0.0
    %v534 = vmax.f32 %v496, 0.0
    %v535 = vmax.f32 %v499, 0.0
    %v536 = vmax.f32 %v504, 0.0
    %v537 = vmax.f32 %v507, 0.0
    %v538 = vmax.f32 %v512, 0.0
    %v539 = vmax.f32 %v515, 0.0
    %v540 = vmax.f32 %v520, 0.0
    %v541 = vmax.f32 %v523, 0.0
    %v542 = vpack.c.bf16 %v527, %v526
    %v543 = vpack.c.bf16 %v529, %v528
    %v544 = vpack.c.bf16 %v531, %v530
    %v545 = vpack.c.bf16 %v533, %v532
    %v546 = vpack.c.bf16 %v535, %v534
    %v547 = vpack.c.bf16 %v537, %v536
    %v548 = vpack.c.bf16 %v539, %v538
    %v549 = vpack.c.bf16 %v541, %v540
    %v550 = vld [vmem:[#allocation8] sm:$0xff]
    %v551 = vld [vmem:[#allocation8 + $0x8] sm:$0xff]
    %v552 = vld [vmem:[#allocation8 + $0x10] sm:$0xff]
    %v553 = vld [vmem:[#allocation8 + $0x18] sm:$0xff]
    %v554 = vld [vmem:[#allocation8 + $0x20] sm:$0xff]
    %v555 = vld [vmem:[#allocation8 + $0x28] sm:$0xff]
    %v556 = vld [vmem:[#allocation8 + $0x30] sm:$0xff]
    %v557 = vld [vmem:[#allocation8 + $0x38] sm:$0xff]
    %v558 = vld [vmem:[#allocation8 + $0x40] sm:$0xff]
    %v559 = vld [vmem:[#allocation8 + $0x48] sm:$0xff]
    %v560 = vld [vmem:[#allocation8 + $0x50] sm:$0xff]
    %v561 = vld [vmem:[#allocation8 + $0x58] sm:$0xff]
    %v562 = vld [vmem:[#allocation8 + $0x60] sm:$0xff]
    %v563 = vld [vmem:[#allocation8 + $0x68] sm:$0xff]
    %v564 = vld [vmem:[#allocation8 + $0x70] sm:$0xff]
    %v565 = vld [vmem:[#allocation8 + $0x78] sm:$0xff]
    %v566 = vld [vmem:[%s6] sm:$0x3]
    %v568 = vlaneseq
    %v569 = vshrl.u32 %v568, 7
    %v570 = vsub.s32 0, %v569
    %v571 = vrot.slane %v566, %v570
    %v572 = vlaneseq
    %v573 = vshrl.u32 %v572, 7
    %v574 = vsub.s32 1, %v573
    %v575 = vrot.slane %v566, %v574
    %v594 = vunpack.c.l.b16 %v550
    %v595 = vunpack.c.h.b16 %v550
    %v596 = vunpack.c.l.b16 %v551
    %v597 = vunpack.c.h.b16 %v551
    %v598 = vunpack.c.l.b16 %v552
    %v599 = vunpack.c.h.b16 %v552
    %v600 = vunpack.c.l.b16 %v553
    %v601 = vunpack.c.h.b16 %v553
    %v602 = vunpack.c.l.b16 %v554
    %v603 = vunpack.c.h.b16 %v554
    %v604 = vunpack.c.l.b16 %v555
    %v605 = vunpack.c.h.b16 %v555
    %v606 = vunpack.c.l.b16 %v556
    %v607 = vunpack.c.h.b16 %v556
    %v608 = vunpack.c.l.b16 %v557
    %v609 = vunpack.c.h.b16 %v557
    %v610 = vunpack.c.l.b16 %v558
    %v611 = vunpack.c.h.b16 %v558
    %v612 = vunpack.c.l.b16 %v559
    %v613 = vunpack.c.h.b16 %v559
    %v614 = vunpack.c.l.b16 %v560
    %v615 = vunpack.c.h.b16 %v560
    %v616 = vunpack.c.l.b16 %v561
    %v617 = vunpack.c.h.b16 %v561
    %v618 = vunpack.c.l.b16 %v562
    %v619 = vunpack.c.h.b16 %v562
    %v620 = vunpack.c.l.b16 %v563
    %v621 = vunpack.c.h.b16 %v563
    %v622 = vunpack.c.l.b16 %v564
    %v623 = vunpack.c.h.b16 %v564
    %v624 = vunpack.c.l.b16 %v565
    %v625 = vunpack.c.h.b16 %v565
    %v626 = vpack.c.b16 %v596, %v594
    %v627 = vpack.c.b16 %v597, %v595
    %v628 = vpack.c.b16 %v600, %v598
    %v629 = vpack.c.b16 %v601, %v599
    %v630 = vpack.c.b16 %v604, %v602
    %v631 = vpack.c.b16 %v605, %v603
    %v632 = vpack.c.b16 %v608, %v606
    %v633 = vpack.c.b16 %v609, %v607
    %v634 = vpack.c.b16 %v612, %v610
    %v635 = vpack.c.b16 %v613, %v611
    %v636 = vpack.c.b16 %v616, %v614
    %v637 = vpack.c.b16 %v617, %v615
    %v638 = vpack.c.b16 %v620, %v618
    %v639 = vpack.c.b16 %v621, %v619
    %v640 = vpack.c.b16 %v624, %v622
    %v641 = vpack.c.b16 %v625, %v623
    %658 = vmatprep.subr.bf16.mxu0 %v627
    %659 = vmatpush1.bf16.msra.mxu0 %v626
    %660 = vmatprep.subr.bf16.mxu0 %v629
    %661 = vmatpush1.bf16.msra.mxu0 %v628
    %662 = vmatprep.subr.bf16.mxu0 %v631
    %663 = vmatpush1.bf16.msra.mxu0 %v630
    %664 = vmatprep.subr.bf16.mxu0 %v633
    %665 = vmatpush1.bf16.msra.mxu0 %v632
    %666 = vmatprep.subr.bf16.mxu0 %v635
    %667 = vmatpush1.bf16.msra.mxu0 %v634
    %668 = vmatprep.subr.bf16.mxu0 %v637
    %669 = vmatpush1.bf16.msra.mxu0 %v636
    %670 = vmatprep.subr.bf16.mxu0 %v639
    %671 = vmatpush1.bf16.msra.mxu0 %v638
    %672 = vmatprep.subr.bf16.mxu0 %v641
    %673 = vmatpush1.bf16.msra.mxu0 %v640
    %674 = vmatprep.subr.bf16.mxu0 0
    %675 = vmatpush1.bf16.msra.mxu0 0
    %676 = vmatprep.subr.bf16.mxu0 0
    %677 = vmatpush1.bf16.msra.mxu0 0
    %678 = vmatprep.subr.bf16.mxu0 0
    %679 = vmatpush1.bf16.msra.mxu0 0
    %680 = vmatprep.subr.bf16.mxu0 0
    %681 = vmatpush1.bf16.msra.mxu0 0
    %682 = vmatprep.subr.bf16.mxu0 0
    %683 = vmatpush1.bf16.msra.mxu0 0
    %684 = vmatprep.subr.bf16.mxu0 0
    %685 = vmatpush1.bf16.msra.mxu0 0
    %686 = vmatprep.subr.bf16.mxu0 0
    %687 = vmatpush1.bf16.msra.mxu0 0
    %688 = vmatprep.subr.bf16.mxu0 0
    %689 = vmatpush1.bf16.msra.mxu0 0
    %690 = vmatprep.mubr.bf16.mxu0 0
    %691 = vmatmul.mubr.bf16.gmra.mrb[0].mxu0 %v542
    %v692 = vpop.f32.mrb[0].mxu0
    %v693 = vadd.f32 %v571, %v692
    %v694 = vpop.f32.mrb[0].mxu0
    %v695 = vadd.f32 %v575, %v694
    %v696 = vpop.f32.mrb[0].mxu0
    %v697 = vadd.f32 %v571, %v696
    %v698 = vpop.f32.mrb[0].mxu0
    %v699 = vadd.f32 %v575, %v698
    %700 = vmatprep.mubr.bf16.mxu0 0
    %701 = vmatmul.mubr.bf16.gmra.mrb[0].mxu0 %v543
    %v702 = vpop.f32.mrb[0].mxu0
    %v703 = vadd.f32 %v571, %v702
    %v704 = vpop.f32.mrb[0].mxu0
    %v705 = vadd.f32 %v575, %v704
    %v706 = vpop.f32.mrb[0].mxu0
    %v707 = vadd.f32 %v571, %v706
    %v708 = vpop.f32.mrb[0].mxu0
    %v709 = vadd.f32 %v575, %v708
    %710 = vmatprep.mubr.bf16.mxu0 0
    %711 = vmatmul.mubr.bf16.gmra.mrb[0].mxu0 %v544
    %v712 = vpop.f32.mrb[0].mxu0
    %v713 = vadd.f32 %v571, %v712
    %v714 = vpop.f32.mrb[0].mxu0
    %v715 = vadd.f32 %v575, %v714
    %v716 = vpop.f32.mrb[0].mxu0
    %v717 = vadd.f32 %v571, %v716
    %v718 = vpop.f32.mrb[0].mxu0
    %v719 = vadd.f32 %v575, %v718
    %720 = vmatprep.mubr.bf16.mxu0 0
    %721 = vmatmul.mubr.bf16.gmra.mrb[0].mxu0 %v545
    %v722 = vpop.f32.mrb[0].mxu0
    %v723 = vadd.f32 %v571, %v722
    %v724 = vpop.f32.mrb[0].mxu0
    %v725 = vadd.f32 %v575, %v724
    %v726 = vpop.f32.mrb[0].mxu0
    %v727 = vadd.f32 %v571, %v726
    %v728 = vpop.f32.mrb[0].mxu0
    %v729 = vadd.f32 %v575, %v728
    %730 = vmatprep.mubr.bf16.mxu0 0
    %731 = vmatmul.mubr.bf16.gmra.mrb[0].mxu0 %v546
    %v732 = vpop.f32.mrb[0].mxu0
    %v733 = vadd.f32 %v571, %v732
    %v734 = vpop.f32.mrb[0].mxu0
    %v735 = vadd.f32 %v575, %v734
    %v736 = vpop.f32.mrb[0].mxu0
    %v737 = vadd.f32 %v571, %v736
    %v738 = vpop.f32.mrb[0].mxu0
    %v739 = vadd.f32 %v575, %v738
    %740 = vmatprep.mubr.bf16.mxu0 0
    %741 = vmatmul.mubr.bf16.gmra.mrb[0].mxu0 %v547
    %v742 = vpop.f32.mrb[0].mxu0
    %v743 = vadd.f32 %v571, %v742
    %v744 = vpop.f32.mrb[0].mxu0
    %v745 = vadd.f32 %v575, %v744
    %v746 = vpop.f32.mrb[0].mxu0
    %v747 = vadd.f32 %v571, %v746
    %v748 = vpop.f32.mrb[0].mxu0
    %v749 = vadd.f32 %v575, %v748
    %750 = vmatprep.mubr.bf16.mxu0 0
    %751 = vmatmul.mubr.bf16.gmra.mrb[0].mxu0 %v548
    %v752 = vpop.f32.mrb[0].mxu0
    %v753 = vadd.f32 %v571, %v752
    %v754 = vpop.f32.mrb[0].mxu0
    %v755 = vadd.f32 %v575, %v754
    %v756 = vpop.f32.mrb[0].mxu0
    %v757 = vadd.f32 %v571, %v756
    %v758 = vpop.f32.mrb[0].mxu0
    %v759 = vadd.f32 %v575, %v758
    %760 = vmatprep.mubr.bf16.mxu0 0
    %761 = vmatmul.mubr.bf16.gmra.mrb[0].mxu0 %v549
    %v762 = vpop.f32.mrb[0].mxu0
    %v763 = vadd.f32 %v571, %v762
    %v764 = vpop.f32.mrb[0].mxu0
    %v765 = vadd.f32 %v575, %v764
    %v766 = vpop.f32.mrb[0].mxu0
    %v767 = vadd.f32 %v571, %v766
    %v768 = vpop.f32.mrb[0].mxu0
    %v769 = vadd.f32 %v575, %v768
    %770 = vdwg.mxu0
    %v771 = vmax.f32 %v693, 0.0
    %v772 = vmax.f32 %v695, 0.0
    %v773 = vmax.f32 %v697, 0.0
    %v774 = vmax.f32 %v699, 0.0
    %v775 = vmax.f32 %v703, 0.0
    %v776 = vmax.f32 %v705, 0.0
    %v777 = vmax.f32 %v707, 0.0
    %v778 = vmax.f32 %v709, 0.0
    %v779 = vmax.f32 %v713, 0.0
    %v780 = vmax.f32 %v715, 0.0
    %v781 = vmax.f32 %v717, 0.0
    %v782 = vmax.f32 %v719, 0.0
    %v783 = vmax.f32 %v723, 0.0
    %v784 = vmax.f32 %v725, 0.0
    %v785 = vmax.f32 %v727, 0.0
    %v786 = vmax.f32 %v729, 0.0
    %v787 = vmax.f32 %v733, 0.0
    %v788 = vmax.f32 %v735, 0.0
    %v789 = vmax.f32 %v737, 0.0
    %v790 = vmax.f32 %v739, 0.0
    %v791 = vmax.f32 %v743, 0.0
    %v792 = vmax.f32 %v745, 0.0
    %v793 = vmax.f32 %v747, 0.0
    %v794 = vmax.f32 %v749, 0.0
    %v795 = vmax.f32 %v753, 0.0
    %v796 = vmax.f32 %v755, 0.0
    %v797 = vmax.f32 %v757, 0.0
    %v798 = vmax.f32 %v759, 0.0
    %v799 = vmax.f32 %v763, 0.0
    %v800 = vmax.f32 %v765, 0.0
    %v801 = vmax.f32 %v767, 0.0
    %v802 = vmax.f32 %v769, 0.0
    %v803 = vpack.c.bf16 %v773, %v771
    %v804 = vpack.c.bf16 %v774, %v772
    %v805 = vpack.c.bf16 %v777, %v775
    %v806 = vpack.c.bf16 %v778, %v776
    %v807 = vpack.c.bf16 %v781, %v779
    %v808 = vpack.c.bf16 %v782, %v780
    %v809 = vpack.c.bf16 %v785, %v783
    %v810 = vpack.c.bf16 %v786, %v784
    %v811 = vpack.c.bf16 %v789, %v787
    %v812 = vpack.c.bf16 %v790, %v788
    %v813 = vpack.c.bf16 %v793, %v791
    %v814 = vpack.c.bf16 %v794, %v792
    %v815 = vpack.c.bf16 %v797, %v795
    %v816 = vpack.c.bf16 %v798, %v796
    %v817 = vpack.c.bf16 %v801, %v799
    %v818 = vpack.c.bf16 %v802, %v800
    %v819 = vld [vmem:[#allocation10] sm:$0xf]
    %v820 = vld [vmem:[#allocation10 + $0x4] sm:$0xf]
    %v821 = vld [vmem:[#allocation10 + $0x8] sm:$0xf]
    %v822 = vld [vmem:[#allocation10 + $0xc] sm:$0xf]
    %v823 = vld [vmem:[#allocation10 + $0x10] sm:$0xf]
    %v824 = vld [vmem:[#allocation10 + $0x14] sm:$0xf]
    %v825 = vld [vmem:[#allocation10 + $0x18] sm:$0xf]
    %v826 = vld [vmem:[#allocation10 + $0x1c] sm:$0xf]
    %v827 = vld [vmem:[#allocation10 + $0x20] sm:$0xf]
    %v828 = vld [vmem:[#allocation10 + $0x24] sm:$0xf]
    %v829 = vld [vmem:[#allocation10 + $0x28] sm:$0xf]
    %v830 = vld [vmem:[#allocation10 + $0x2c] sm:$0xf]
    %v831 = vld [vmem:[#allocation10 + $0x30] sm:$0xf]
    %v832 = vld [vmem:[#allocation10 + $0x34] sm:$0xf]
    %v833 = vld [vmem:[#allocation10 + $0x38] sm:$0xf]
    %v834 = vld [vmem:[#allocation10 + $0x3c] sm:$0xf]
    %v835 = vld [vmem:[#allocation10 + $0x40] sm:$0xf]
    %v836 = vld [vmem:[#allocation10 + $0x44] sm:$0xf]
    %v837 = vld [vmem:[#allocation10 + $0x48] sm:$0xf]
    %v838 = vld [vmem:[#allocation10 + $0x4c] sm:$0xf]
    %v839 = vld [vmem:[#allocation10 + $0x50] sm:$0xf]
    %v840 = vld [vmem:[#allocation10 + $0x54] sm:$0xf]
    %v841 = vld [vmem:[#allocation10 + $0x58] sm:$0xf]
    %v842 = vld [vmem:[#allocation10 + $0x5c] sm:$0xf]
    %v843 = vld [vmem:[#allocation10 + $0x60] sm:$0xf]
    %v844 = vld [vmem:[#allocation10 + $0x64] sm:$0xf]
    %v845 = vld [vmem:[#allocation10 + $0x68] sm:$0xf]
    %v846 = vld [vmem:[#allocation10 + $0x6c] sm:$0xf]
    %v847 = vld [vmem:[#allocation10 + $0x70] sm:$0xf]
    %v848 = vld [vmem:[#allocation10 + $0x74] sm:$0xf]
    %v849 = vld [vmem:[#allocation10 + $0x78] sm:$0xf]
    %v850 = vld [vmem:[#allocation10 + $0x7c] sm:$0xf]
    %v851 = vld [vmem:[%s8] sm:$0x1]
    %v853 = vlaneseq
    %v854 = vshrl.u32 %v853, 7
    %v855 = vsub.s32 0, %v854
    %v856 = vrot.slane %v851, %v855
    %v890 = vunpack.c.l.b16 %v819
    %v891 = vunpack.c.l.b16 %v820
    %v892 = vunpack.c.l.b16 %v821
    %v893 = vunpack.c.l.b16 %v822
    %v894 = vunpack.c.l.b16 %v823
    %v895 = vunpack.c.l.b16 %v824
    %v896 = vunpack.c.l.b16 %v825
    %v897 = vunpack.c.l.b16 %v826
    %v898 = vunpack.c.l.b16 %v827
    %v899 = vunpack.c.l.b16 %v828
    %v900 = vunpack.c.l.b16 %v829
    %v901 = vunpack.c.l.b16 %v830
    %v902 = vunpack.c.l.b16 %v831
    %v903 = vunpack.c.l.b16 %v832
    %v904 = vunpack.c.l.b16 %v833
    %v905 = vunpack.c.l.b16 %v834
    %v906 = vunpack.c.l.b16 %v835
    %v907 = vunpack.c.l.b16 %v836
    %v908 = vunpack.c.l.b16 %v837
    %v909 = vunpack.c.l.b16 %v838
    %v910 = vunpack.c.l.b16 %v839
    %v911 = vunpack.c.l.b16 %v840
    %v912 = vunpack.c.l.b16 %v841
    %v913 = vunpack.c.l.b16 %v842
    %v914 = vunpack.c.l.b16 %v843
    %v915 = vunpack.c.l.b16 %v844
    %v916 = vunpack.c.l.b16 %v845
    %v917 = vunpack.c.l.b16 %v846
    %v918 = vunpack.c.l.b16 %v847
    %v919 = vunpack.c.l.b16 %v848
    %v920 = vunpack.c.l.b16 %v849
    %v921 = vunpack.c.l.b16 %v850
    %v922 = vpack.c.b16 %v891, %v890
    %v923 = vpack.c.b16 %v893, %v892
    %v924 = vpack.c.b16 %v895, %v894
    %v925 = vpack.c.b16 %v897, %v896
    %v926 = vpack.c.b16 %v899, %v898
    %v927 = vpack.c.b16 %v901, %v900
    %v928 = vpack.c.b16 %v903, %v902
    %v929 = vpack.c.b16 %v905, %v904
    %v930 = vpack.c.b16 %v907, %v906
    %v931 = vpack.c.b16 %v909, %v908
    %v932 = vpack.c.b16 %v911, %v910
    %v933 = vpack.c.b16 %v913, %v912
    %v934 = vpack.c.b16 %v915, %v914
    %v935 = vpack.c.b16 %v917, %v916
    %v936 = vpack.c.b16 %v919, %v918
    %v937 = vpack.c.b16 %v921, %v920
    %954 = vmatprep.subr.bf16.mxu0 0
    %955 = vmatpush1.bf16.msra.mxu0 %v922
    %956 = vmatprep.subr.bf16.mxu0 0
    %957 = vmatpush1.bf16.msra.mxu0 %v923
    %958 = vmatprep.subr.bf16.mxu0 0
    %959 = vmatpush1.bf16.msra.mxu0 %v924
    %960 = vmatprep.subr.bf16.mxu0 0
    %961 = vmatpush1.bf16.msra.mxu0 %v925
    %962 = vmatprep.subr.bf16.mxu0 0
    %963 = vmatpush1.bf16.msra.mxu0 %v926
    %964 = vmatprep.subr.bf16.mxu0 0
    %965 = vmatpush1.bf16.msra.mxu0 %v927
    %966 = vmatprep.subr.bf16.mxu0 0
    %967 = vmatpush1.bf16.msra.mxu0 %v928
    %968 = vmatprep.subr.bf16.mxu0 0
    %969 = vmatpush1.bf16.msra.mxu0 %v929
    %970 = vmatprep.subr.bf16.mxu0 0
    %971 = vmatpush1.bf16.msra.mxu0 %v930
    %972 = vmatprep.subr.bf16.mxu0 0
    %973 = vmatpush1.bf16.msra.mxu0 %v931
    %974 = vmatprep.subr.bf16.mxu0 0
    %975 = vmatpush1.bf16.msra.mxu0 %v932
    %976 = vmatprep.subr.bf16.mxu0 0
    %977 = vmatpush1.bf16.msra.mxu0 %v933
    %978 = vmatprep.subr.bf16.mxu0 0
    %979 = vmatpush1.bf16.msra.mxu0 %v934
    %980 = vmatprep.subr.bf16.mxu0 0
    %981 = vmatpush1.bf16.msra.mxu0 %v935
    %982 = vmatprep.subr.bf16.mxu0 0
    %983 = vmatpush1.bf16.msra.mxu0 %v936
    %984 = vmatprep.subr.bf16.mxu0 0
    %985 = vmatpush1.bf16.msra.mxu0 %v937
    %986 = vmatprep.mubr.bf16.mxu0 %v804
    %987 = vmatmul.mubr.bf16.gmra.mrb[0].mxu0 %v803
    %v988 = vpop.f32.mrb[0].mxu0
    %v989 = vadd.f32 %v856, %v988
    %v990 = vpop.f32.mrb[0].mxu0
    %v991 = vpop.f32.mrb[0].mxu0
    %v992 = vadd.f32 %v856, %v991
    %v993 = vpop.f32.mrb[0].mxu0
    %994 = vmatprep.mubr.bf16.mxu0 %v806
    %995 = vmatmul.mubr.bf16.gmra.mrb[0].mxu0 %v805
    %v996 = vpop.f32.mrb[0].mxu0
    %v997 = vadd.f32 %v856, %v996
    %v998 = vpop.f32.mrb[0].mxu0
    %v999 = vpop.f32.mrb[0].mxu0
    %v1000 = vadd.f32 %v856, %v999
    %v1001 = vpop.f32.mrb[0].mxu0
    %1002 = vmatprep.mubr.bf16.mxu0 %v808
    %1003 = vmatmul.mubr.bf16.gmra.mrb[0].mxu0 %v807
    %v1004 = vpop.f32.mrb[0].mxu0
    %v1005 = vadd.f32 %v856, %v1004
    %v1006 = vpop.f32.mrb[0].mxu0
    %v1007 = vpop.f32.mrb[0].mxu0
    %v1008 = vadd.f32 %v856, %v1007
    %v1009 = vpop.f32.mrb[0].mxu0
    %1010 = vmatprep.mubr.bf16.mxu0 %v810
    %1011 = vmatmul.mubr.bf16.gmra.mrb[0].mxu0 %v809
    %v1012 = vpop.f32.mrb[0].mxu0
    %v1013 = vadd.f32 %v856, %v1012
    %v1014 = vpop.f32.mrb[0].mxu0
    %v1015 = vpop.f32.mrb[0].mxu0
    %v1016 = vadd.f32 %v856, %v1015
    %v1017 = vpop.f32.mrb[0].mxu0
    %1018 = vmatprep.mubr.bf16.mxu0 %v812
    %1019 = vmatmul.mubr.bf16.gmra.mrb[0].mxu0 %v811
    %v1020 = vpop.f32.mrb[0].mxu0
    %v1021 = vadd.f32 %v856, %v1020
    %v1022 = vpop.f32.mrb[0].mxu0
    %v1023 = vpop.f32.mrb[0].mxu0
    %v1024 = vadd.f32 %v856, %v1023
    %v1025 = vpop.f32.mrb[0].mxu0
    %1026 = vmatprep.mubr.bf16.mxu0 %v814
    %1027 = vmatmul.mubr.bf16.gmra.mrb[0].mxu0 %v813
    %v1028 = vpop.f32.mrb[0].mxu0
    %v1029 = vadd.f32 %v856, %v1028
    %v1030 = vpop.f32.mrb[0].mxu0
    %v1031 = vpop.f32.mrb[0].mxu0
    %v1032 = vadd.f32 %v856, %v1031
    %v1033 = vpop.f32.mrb[0].mxu0
    %1034 = vmatprep.mubr.bf16.mxu0 %v816
    %1035 = vmatmul.mubr.bf16.gmra.mrb[0].mxu0 %v815
    %v1036 = vpop.f32.mrb[0].mxu0
    %v1037 = vadd.f32 %v856, %v1036
    %v1038 = vpop.f32.mrb[0].mxu0
    %v1039 = vpop.f32.mrb[0].mxu0
    %v1040 = vadd.f32 %v856, %v1039
    %v1041 = vpop.f32.mrb[0].mxu0
    %1042 = vmatprep.mubr.bf16.mxu0 %v818
    %1043 = vmatmul.mubr.bf16.gmra.mrb[0].mxu0 %v817
    %v1044 = vpop.f32.mrb[0].mxu0
    %v1045 = vadd.f32 %v856, %v1044
    %v1046 = vpop.f32.mrb[0].mxu0
    %v1047 = vpop.f32.mrb[0].mxu0
    %v1048 = vadd.f32 %v856, %v1047
    %v1049 = vpop.f32.mrb[0].mxu0
    %1050 = vdwg.mxu0
    %1067 = vrot.lane.b32.xlu0 %v989, 127
    %v1068 = vpop.permute.xlu0 %1067
    %1069 = vrot.lane.b32.xlu0 %v992, 127
    %v1070 = vpop.permute.xlu0 %1069
    %1071 = vrot.lane.b32.xlu0 %v997, 127
    %v1072 = vpop.permute.xlu0 %1071
    %1073 = vrot.lane.b32.xlu0 %v1000, 127
    %v1074 = vpop.permute.xlu0 %1073
    %1075 = vrot.lane.b32.xlu0 %v1005, 127
    %v1076 = vpop.permute.xlu0 %1075
    %1077 = vrot.lane.b32.xlu0 %v1008, 127
    %v1078 = vpop.permute.xlu0 %1077
    %1079 = vrot.lane.b32.xlu0 %v1013, 127
    %v1080 = vpop.permute.xlu0 %1079
    %1081 = vrot.lane.b32.xlu0 %v1016, 127
    %v1082 = vpop.permute.xlu0 %1081
    %1083 = vrot.lane.b32.xlu0 %v1021, 127
    %v1084 = vpop.permute.xlu0 %1083
    %1085 = vrot.lane.b32.xlu0 %v1024, 127
    %v1086 = vpop.permute.xlu0 %1085
    %1087 = vrot.lane.b32.xlu0 %v1029, 127
    %v1088 = vpop.permute.xlu0 %1087
    %1089 = vrot.lane.b32.xlu0 %v1032, 127
    %v1090 = vpop.permute.xlu0 %1089
    %1091 = vrot.lane.b32.xlu0 %v1037, 127
    %v1092 = vpop.permute.xlu0 %1091
    %1093 = vrot.lane.b32.xlu0 %v1040, 127
    %v1094 = vpop.permute.xlu0 %1093
    %1095 = vrot.lane.b32.xlu0 %v1045, 127
    %v1096 = vpop.permute.xlu0 %1095
    %1097 = vrot.lane.b32.xlu0 %v1048, 127
    %v1098 = vpop.permute.xlu0 %1097
    %vm1115 = vcmask 31744
    %v1116 = vsel %vm1115, %v1068, 0.0
    %1117 = vadd.xlane.f32.xlu0 %v1116
    %v1118 = vpop.xlane.xlu0 %1117
    %v1119 = vsel %vm1115, %v1070, 0.0
    %1120 = vadd.xlane.f32.xlu0 %v1119
    %v1121 = vpop.xlane.xlu0 %1120
    %v1122 = vsel %vm1115, %v1072, 0.0
    %1123 = vadd.xlane.f32.xlu0 %v1122
    %v1124 = vpop.xlane.xlu0 %1123
    %v1125 = vsel %vm1115, %v1074, 0.0
    %1126 = vadd.xlane.f32.xlu0 %v1125
    %v1127 = vpop.xlane.xlu0 %1126
    %v1128 = vsel %vm1115, %v1076, 0.0
    %1129 = vadd.xlane.f32.xlu0 %v1128
    %v1130 = vpop.xlane.xlu0 %1129
    %v1131 = vsel %vm1115, %v1078, 0.0
    %1132 = vadd.xlane.f32.xlu0 %v1131
    %v1133 = vpop.xlane.xlu0 %1132
    %v1134 = vsel %vm1115, %v1080, 0.0
    %1135 = vadd.xlane.f32.xlu0 %v1134
    %v1136 = vpop.xlane.xlu0 %1135
    %v1137 = vsel %vm1115, %v1082, 0.0
    %1138 = vadd.xlane.f32.xlu0 %v1137
    %v1139 = vpop.xlane.xlu0 %1138
    %v1140 = vsel %vm1115, %v1084, 0.0
    %1141 = vadd.xlane.f32.xlu0 %v1140
    %v1142 = vpop.xlane.xlu0 %1141
    %v1143 = vsel %vm1115, %v1086, 0.0
    %1144 = vadd.xlane.f32.xlu0 %v1143
    %v1145 = vpop.xlane.xlu0 %1144
    %v1146 = vsel %vm1115, %v1088, 0.0
    %1147 = vadd.xlane.f32.xlu0 %v1146
    %v1148 = vpop.xlane.xlu0 %1147
    %v1149 = vsel %vm1115, %v1090, 0.0
    %1150 = vadd.xlane.f32.xlu0 %v1149
    %v1151 = vpop.xlane.xlu0 %1150
    %v1152 = vsel %vm1115, %v1092, 0.0
    %1153 = vadd.xlane.f32.xlu0 %v1152
    %v1154 = vpop.xlane.xlu0 %1153
    %v1155 = vsel %vm1115, %v1094, 0.0
    %1156 = vadd.xlane.f32.xlu0 %v1155
    %v1157 = vpop.xlane.xlu0 %1156
    %v1158 = vsel %vm1115, %v1096, 0.0
    %1159 = vadd.xlane.f32.xlu0 %v1158
    %v1160 = vpop.xlane.xlu0 %1159
    %v1161 = vsel %vm1115, %v1098, 0.0
    %1162 = vadd.xlane.f32.xlu0 %v1161
    %v1163 = vpop.xlane.xlu0 %1162
    %v1164 = vrcp.pop 4.0
    %v1165 = vmul.f32 %v1118, %v1164
    %v1166 = vmul.f32 %v1121, %v1164
    %v1167 = vmul.f32 %v1124, %v1164
    %v1168 = vmul.f32 %v1127, %v1164
    %v1169 = vmul.f32 %v1130, %v1164
    %v1170 = vmul.f32 %v1133, %v1164
    %v1171 = vmul.f32 %v1136, %v1164
    %v1172 = vmul.f32 %v1139, %v1164
    %v1173 = vmul.f32 %v1142, %v1164
    %v1174 = vmul.f32 %v1145, %v1164
    %v1175 = vmul.f32 %v1148, %v1164
    %v1176 = vmul.f32 %v1151, %v1164
    %v1177 = vmul.f32 %v1154, %v1164
    %v1178 = vmul.f32 %v1157, %v1164
    %v1179 = vmul.f32 %v1160, %v1164
    %v1180 = vmul.f32 %v1163, %v1164
    %v1181 = vsub.f32 %v989, %v1165
    %v1182 = vsub.f32 %v992, %v1166
    %v1183 = vsub.f32 %v997, %v1167
    %v1184 = vsub.f32 %v1000, %v1168
    %v1185 = vsub.f32 %v1005, %v1169
    %v1186 = vsub.f32 %v1008, %v1170
    %v1187 = vsub.f32 %v1013, %v1171
    %v1188 = vsub.f32 %v1016, %v1172
    %v1189 = vsub.f32 %v1021, %v1173
    %v1190 = vsub.f32 %v1024, %v1174
    %v1191 = vsub.f32 %v1029, %v1175
    %v1192 = vsub.f32 %v1032, %v1176
    %v1193 = vsub.f32 %v1037, %v1177
    %v1194 = vsub.f32 %v1040, %v1178
    %v1195 = vsub.f32 %v1045, %v1179
    %v1196 = vsub.f32 %v1048, %v1180
    %1198 = vset.pattern.permute.xlu0 0
    %1199 = vperm.xlu0 %1198, %v1181
    %v1200 = vpop.permute.xlu0 %1199
    %1203 = vset.pattern.permute.xlu0 0
    %1204 = vperm.xlu0 %1203, %v1182
    %v1205 = vpop.permute.xlu0 %1204
    %1208 = vset.pattern.permute.xlu0 0
    %1209 = vperm.xlu0 %1208, %v1183
    %v1210 = vpop.permute.xlu0 %1209
    %1213 = vset.pattern.permute.xlu0 0
    %1214 = vperm.xlu0 %1213, %v1184
    %v1215 = vpop.permute.xlu0 %1214
    %1218 = vset.pattern.permute.xlu0 0
    %1219 = vperm.xlu0 %1218, %v1185
    %v1220 = vpop.permute.xlu0 %1219
    %1223 = vset.pattern.permute.xlu0 0
    %1224 = vperm.xlu0 %1223, %v1186
    %v1225 = vpop.permute.xlu0 %1224
    %1228 = vset.pattern.permute.xlu0 0
    %1229 = vperm.xlu0 %1228, %v1187
    %v1230 = vpop.permute.xlu0 %1229
    %1233 = vset.pattern.permute.xlu0 0
    %1234 = vperm.xlu0 %1233, %v1188
    %v1235 = vpop.permute.xlu0 %1234
    %1238 = vset.pattern.permute.xlu0 0
    %1239 = vperm.xlu0 %1238, %v1189
    %v1240 = vpop.permute.xlu0 %1239
    %1243 = vset.pattern.permute.xlu0 0
    %1244 = vperm.xlu0 %1243, %v1190
    %v1245 = vpop.permute.xlu0 %1244
    %1248 = vset.pattern.permute.xlu0 0
    %1249 = vperm.xlu0 %1248, %v1191
    %v1250 = vpop.permute.xlu0 %1249
    %1253 = vset.pattern.permute.xlu0 0
    %1254 = vperm.xlu0 %1253, %v1192
    %v1255 = vpop.permute.xlu0 %1254
    %1258 = vset.pattern.permute.xlu0 0
    %1259 = vperm.xlu0 %1258, %v1193
    %v1260 = vpop.permute.xlu0 %1259
    %1263 = vset.pattern.permute.xlu0 0
    %1264 = vperm.xlu0 %1263, %v1194
    %v1265 = vpop.permute.xlu0 %1264
    %1268 = vset.pattern.permute.xlu0 0
    %1269 = vperm.xlu0 %1268, %v1195
    %v1270 = vpop.permute.xlu0 %1269
    %1273 = vset.pattern.permute.xlu0 0
    %1274 = vperm.xlu0 %1273, %v1196
    %v1275 = vpop.permute.xlu0 %1274
    %v1277 = vadd.f32 %v989, %v1200
    %v1278 = vadd.f32 %v992, %v1205
    %v1279 = vadd.f32 %v997, %v1210
    %v1280 = vadd.f32 %v1000, %v1215
    %v1281 = vadd.f32 %v1005, %v1220
    %v1282 = vadd.f32 %v1008, %v1225
    %v1283 = vadd.f32 %v1013, %v1230
    %v1284 = vadd.f32 %v1016, %v1235
    %v1285 = vadd.f32 %v1021, %v1240
    %v1286 = vadd.f32 %v1024, %v1245
    %v1287 = vadd.f32 %v1029, %v1250
    %v1288 = vadd.f32 %v1032, %v1255
    %v1289 = vadd.f32 %v1037, %v1260
    %v1290 = vadd.f32 %v1040, %v1265
    %v1291 = vadd.f32 %v1045, %v1270
    %v1292 = vadd.f32 %v1048, %v1275
    %1293 = vst [vmem:[#allocation11] sm:$0xff] %v1277
    %1294 = vst [vmem:[#allocation11 + $0x8] sm:$0xff] %v1278
    %1295 = vst [vmem:[#allocation11 + $0x10] sm:$0xff] %v1279
    %1296 = vst [vmem:[#allocation11 + $0x18] sm:$0xff] %v1280
    %1297 = vst [vmem:[#allocation11 + $0x20] sm:$0xff] %v1281
    %1298 = vst [vmem:[#allocation11 + $0x28] sm:$0xff] %v1282
    %1299 = vst [vmem:[#allocation11 + $0x30] sm:$0xff] %v1283
    %1300 = vst [vmem:[#allocation11 + $0x38] sm:$0xff] %v1284
    %1301 = vst [vmem:[#allocation11 + $0x40] sm:$0xff] %v1285
    %1302 = vst [vmem:[#allocation11 + $0x48] sm:$0xff] %v1286
    %1303 = vst [vmem:[#allocation11 + $0x50] sm:$0xff] %v1287
    %1304 = vst [vmem:[#allocation11 + $0x58] sm:$0xff] %v1288
    %1305 = vst [vmem:[#allocation11 + $0x60] sm:$0xff] %v1289
    %1306 = vst [vmem:[#allocation11 + $0x68] sm:$0xff] %v1290
    %1307 = vst [vmem:[#allocation11 + $0x70] sm:$0xff] %v1291
    %1308 = vst [vmem:[#allocation11 + $0x78] sm:$0xff] %v1292
    // Predicated region
    $region58: #{tpu_custom_call.1} parent=1 // pred_check
      _
    $region59: #{tpu_custom_call.1} parent=1 // pred_check_branch
      %1310 = sbr.rel (0) target = $region61
    $region60: #{tpu_custom_call.1} parent=1 // pred_region
      %s1312 = ssub.s32 2048, 2048
      %1313 = vsyncadd [#allocation4], %s1312
      %s1314 = sshll.u32 [#allocation11], 4
      %s1315 = int_to_ptr.vmem [resolvable:$true] %s1314
      %1320 = dma.vmem_to_hbm [thread:$0]  %s1315, 2048, %s9, [#allocation4], 128, 128, 8
    $region61: #{tpu_custom_call.1} parent=1 // pred_fallthru
      _
    // Predicated region
    $region62: #{tpu_custom_call.1} parent=1 // pred_check
      _
    $region63: #{tpu_custom_call.1} parent=1 // pred_check_branch
      %1322 = sbr.rel (0) target = $region65
    $region64: #{tpu_custom_call.1} parent=1 // pred_region
      %1323 = dma.done [#allocation4], 2048
    $region65: #{tpu_custom_call.1} parent=1 // pred_fallthru
      _
    %1324 = vsyncpa [#allocation3], 1
    %1325 = vsyncpa [#allocation6], 1
    %1326 = vsyncpa [#allocation9], 1
    %1327 = vsyncpa [#allocation4], 1

// kernel: tpu_custom_call.1
$region0: #{tpu_custom_call.1}
  #allocation0 [shape = 'u32[]', space=smem, size = 0x4, offset = 0x4, fixed_abs, tag = 'smem constant byte address 0x4 - core index']
  #allocation1 [shape = 'u32[144,128]{1,0:T(1,128)}', space=vmem, size = 0x12000, scoped, tag = 'internal scratch']
  %s0 = inlined_call_operand.hbm [shape: bf16[128,128], index: 0, kind: input, shape index: {}]
  %s1 = inlined_call_operand.hbm [shape: bf16[128,128], index: 1, kind: input, shape index: {}]
  %s2 = inlined_call_operand.vmem [shape: f32[1,128], index: 2, kind: input, shape index: {}]
  %s3 = inlined_call_operand.hbm [shape: bf16[128,128], index: 3, kind: input, shape index: {}]
  %s4 = inlined_call_operand.vmem [shape: f32[1,128], index: 4, kind: input, shape index: {}]
  %s5 = inlined_call_operand.hbm [shape: bf16[128,256], index: 5, kind: input, shape index: {}]
  %s6 = inlined_call_operand.vmem [shape: f32[1,256], index: 6, kind: input, shape index: {}]
  %s7 = inlined_call_operand.hbm [shape: bf16[256,128], index: 7, kind: input, shape index: {}]
  %s8 = inlined_call_operand.vmem [shape: f32[1,128], index: 8, kind: input, shape index: {}]
  %s9 = inlined_call_operand.hbm [shape: f32[128,128], index: 9, kind: output, shape index: {}]
  %s10 = sld [smem:[#allocation0]]
  $region66: #{tpu_custom_call.1} parent=0
    _
  %s12 = ssub.s32 1, %s10
  %s13 = scalar_select 0, %s12, %s10
  $region1: #{tpu_custom_call.1} parent=0
    #allocation2 [shape = 'u8[32768]{0}', space=vmem, size = 0x8000, scoped, tag = 'input window, operand 0, single buffered']
    #allocation3 [shape = 's32[1]{0}', space=sflag, size = 0x4, scoped, tag = 'scoped memory for tpu_custom_call.1']
    #allocation4 [shape = 's32[1]{0}', space=sflag, size = 0x4, scoped, tag = 'scoped memory for tpu_custom_call.1']
    #allocation5 [shape = 'u8[32768]{0}', space=vmem, size = 0x8000, scoped, tag = 'input window, operand 1, single buffered']
    #allocation6 [shape = 's32[1]{0}', space=sflag, size = 0x4, scoped, tag = 'scoped memory for tpu_custom_call.1']
    #allocation7 [shape = 'u8[32768]{0}', space=vmem, size = 0x8000, scoped, tag = 'input window, operand 3, single buffered']
    #allocation8 [shape = 'u8[65536]{0}', space=vmem, size = 0x10000, scoped, tag = 'input window, operand 5, single buffered']
    #allocation9 [shape = 's32[1]{0}', space=sflag, size = 0x4, scoped, tag = 'scoped memory for tpu_custom_call.1']
    #allocation10 [shape = 'u8[65536]{0}', space=vmem, size = 0x10000, scoped, tag = 'input window, operand 7, single buffered']
    #allocation11 [shape = 'u8[65536]{0}', space=vmem, size = 0x10000, scoped, tag = 'output window, operand 0, single buffered']
    %14 = vsyncpa [#allocation3], 0
    %15 = vsyncpa [#allocation6], 0
    %16 = vsyncpa [#allocation9], 0
    %17 = vsyncpa [#allocation4], 0
    // Predicated region
    $region2: #{tpu_custom_call.1} parent=1 // pred_check
      _
    $region3: #{tpu_custom_call.1} parent=1 // pred_check_branch
      %19 = sbr.rel (0) target = $region5
    $region4: #{tpu_custom_call.1} parent=1 // pred_region
      %s21 = ssub.s32 1024, 1024
      %22 = vsyncadd [#allocation3], %s21
      %s23 = sshll.u32 [#allocation2], 4
      %s24 = int_to_ptr.vmem [resolvable:$true] %s23
      %29 = dma.hbm_to_vmem [thread:$0]  %s0, 1024, %s24, [#allocation3], 64, 64, 4
    $region5: #{tpu_custom_call.1} parent=1 // pred_fallthru
      _
    // Predicated region
    $region6: #{tpu_custom_call.1} parent=1 // pred_check
      _
    $region7: #{tpu_custom_call.1} parent=1 // pred_check_branch
      %31 = sbr.rel (0) target = $region9
    $region8: #{tpu_custom_call.1} parent=1 // pred_region
      %s33 = ssub.s32 1024, 1024
      %34 = vsyncadd [#allocation6], %s33
      %s35 = sshll.u32 [#allocation5], 4
      %s36 = int_to_ptr.vmem [resolvable:$true] %s35
      %41 = dma.hbm_to_vmem [thread:$0]  %s1, 1024, %s36, [#allocation6], 64, 64, 4
    $region9: #{tpu_custom_call.1} parent=1 // pred_fallthru
      _
    // Predicated region
    $region10: #{tpu_custom_call.1} parent=1 // pred_check
      _
    $region11: #{tpu_custom_call.1} parent=1 // pred_check_branch
      %43 = sbr.rel (0) target = $region13
    $region12: #{tpu_custom_call.1} parent=1 // pred_region
      _
    $region13: #{tpu_custom_call.1} parent=1 // pred_fallthru
      _
    // Predicated region
    $region14: #{tpu_custom_call.1} parent=1 // pred_check
      _
    $region15: #{tpu_custom_call.1} parent=1 // pred_check_branch
      %45 = sbr.rel (0) target = $region17
    $region16: #{tpu_custom_call.1} parent=1 // pred_region
      %s47 = ssub.s32 1024, 1024
      %48 = vsyncadd [#allocation6], %s47
      %s49 = sshll.u32 [#allocation7], 4
      %s50 = int_to_ptr.vmem [resolvable:$true] %s49
      %55 = dma.hbm_to_vmem [thread:$0]  %s3, 1024, %s50, [#allocation6], 64, 64, 4
    $region17: #{tpu_custom_call.1} parent=1 // pred_fallthru
      _
    // Predicated region
    $region18: #{tpu_custom_call.1} parent=1 // pred_check
      _
    $region19: #{tpu_custom_call.1} parent=1 // pred_check_branch
      %57 = sbr.rel (0) target = $region21
    $region20: #{tpu_custom_call.1} parent=1 // pred_region
      _
    $region21: #{tpu_custom_call.1} parent=1 // pred_fallthru
      _
    // Predicated region
    $region22: #{tpu_custom_call.1} parent=1 // pred_check
      _
    $region23: #{tpu_custom_call.1} parent=1 // pred_check_branch
      %59 = sbr.rel (0) target = $region25
    $region24: #{tpu_custom_call.1} parent=1 // pred_region
      %s61 = ssub.s32 2048, 2048
      %62 = vsyncadd [#allocation9], %s61
      %s63 = sshll.u32 [#allocation8], 4
      %s64 = int_to_ptr.vmem [resolvable:$true] %s63
      %69 = dma.hbm_to_vmem [thread:$0]  %s5, 2048, %s64, [#allocation9], 128, 128, 8
    $region25: #{tpu_custom_call.1} parent=1 // pred_fallthru
      _
    // Predicated region
    $region26: #{tpu_custom_call.1} parent=1 // pred_check
      _
    $region27: #{tpu_custom_call.1} parent=1 // pred_check_branch
      %71 = sbr.rel (0) target = $region29
    $region28: #{tpu_custom_call.1} parent=1 // pred_region
      _
    $region29: #{tpu_custom_call.1} parent=1 // pred_fallthru
      _
    // Predicated region
    $region30: #{tpu_custom_call.1} parent=1 // pred_check
      _
    $region31: #{tpu_custom_call.1} parent=1 // pred_check_branch
      %73 = sbr.rel (0) target = $region33
    $region32: #{tpu_custom_call.1} parent=1 // pred_region
      %s75 = ssub.s32 2048, 2048
      %76 = vsyncadd [#allocation9], %s75
      %s77 = sshll.u32 [#allocation10], 4
      %s78 = int_to_ptr.vmem [resolvable:$true] %s77
      %83 = dma.hbm_to_vmem [thread:$0]  %s7, 2048, %s78, [#allocation9], 64, 64, 4
    $region33: #{tpu_custom_call.1} parent=1 // pred_fallthru
      _
    // Predicated region
    $region34: #{tpu_custom_call.1} parent=1 // pred_check
      _
    $region35: #{tpu_custom_call.1} parent=1 // pred_check_branch
      %85 = sbr.rel (0) target = $region37
    $region36: #{tpu_custom_call.1} parent=1 // pred_region
      _
    $region37: #{tpu_custom_call.1} parent=1 // pred_fallthru
      _
    // Predicated region
    $region38: #{tpu_custom_call.1} parent=1 // pred_check
      _
    $region39: #{tpu_custom_call.1} parent=1 // pred_check_branch
      %87 = sbr.rel (0) target = $region41
    $region40: #{tpu_custom_call.1} parent=1 // pred_region
      %88 = dma.done [#allocation3], 1024
    $region41: #{tpu_custom_call.1} parent=1 // pred_fallthru
      _
    // Predicated region
    $region42: #{tpu_custom_call.1} parent=1 // pred_check
      _
    $region43: #{tpu_custom_call.1} parent=1 // pred_check_branch
      %90 = sbr.rel (0) target = $region45
    $region44: #{tpu_custom_call.1} parent=1 // pred_region
      %91 = dma.done [#allocation6], 1024
    $region45: #{tpu_custom_call.1} parent=1 // pred_fallthru
      _
    // Predicated region
    $region46: #{tpu_custom_call.1} parent=1 // pred_check
      _
    $region47: #{tpu_custom_call.1} parent=1 // pred_check_branch
      %93 = sbr.rel (0) target = $region49
    $region48: #{tpu_custom_call.1} parent=1 // pred_region
      %94 = dma.done [#allocation6], 1024
    $region49: #{tpu_custom_call.1} parent=1 // pred_fallthru
      _
    // Predicated region
    $region50: #{tpu_custom_call.1} parent=1 // pred_check
      _
    $region51: #{tpu_custom_call.1} parent=1 // pred_check_branch
      %96 = sbr.rel (0) target = $region53
    $region52: #{tpu_custom_call.1} parent=1 // pred_region
      %97 = dma.done [#allocation9], 2048
    $region53: #{tpu_custom_call.1} parent=1 // pred_fallthru
      _
    // Predicated region
    $region54: #{tpu_custom_call.1} parent=1 // pred_check
      _
    $region55: #{tpu_custom_call.1} parent=1 // pred_check_branch
      %99 = sbr.rel (0) target = $region57
    $region56: #{tpu_custom_call.1} parent=1 // pred_region
      %100 = dma.done [#allocation9], 2048
    $region57: #{tpu_custom_call.1} parent=1 // pred_fallthru
      _
    %v102 = vld [vmem:[#allocation2] sm:$0xf]
    %v103 = vld [vmem:[#allocation2 + $0x4] sm:$0xf]
    %v104 = vld [vmem:[#allocation2 + $0x8] sm:$0xf]
    %v105 = vld [vmem:[#allocation2 + $0xc] sm:$0xf]
    %v106 = vld [vmem:[#allocation2 + $0x10] sm:$0xf]
    %v107 = vld [vmem:[#allocation2 + $0x14] sm:$0xf]
    %v108 = vld [vmem:[#allocation2 + $0x18] sm:$0xf]
    %v109 = vld [vmem:[#allocation2 + $0x1c] sm:$0xf]
    %v110 = vld [vmem:[#allocation2 + $0x20] sm:$0xf]
    %v111 = vld [vmem:[#allocation2 + $0x24] sm:$0xf]
    %v112 = vld [vmem:[#allocation2 + $0x28] sm:$0xf]
    %v113 = vld [vmem:[#allocation2 + $0x2c] sm:$0xf]
    %v114 = vld [vmem:[#allocation2 + $0x30] sm:$0xf]
    %v115 = vld [vmem:[#allocation2 + $0x34] sm:$0xf]
    %v116 = vld [vmem:[#allocation2 + $0x38] sm:$0xf]
    %v117 = vld [vmem:[#allocation2 + $0x3c] sm:$0xf]
    %v118 = vld [vmem:[#allocation5] sm:$0xf]
    %v119 = vld [vmem:[#allocation5 + $0x4] sm:$0xf]
    %v120 = vld [vmem:[#allocation5 + $0x8] sm:$0xf]
    %v121 = vld [vmem:[#allocation5 + $0xc] sm:$0xf]
    %v122 = vld [vmem:[#allocation5 + $0x10] sm:$0xf]
    %v123 = vld [vmem:[#allocation5 + $0x14] sm:$0xf]
    %v124 = vld [vmem:[#allocation5 + $0x18] sm:$0xf]
    %v125 = vld [vmem:[#allocation5 + $0x1c] sm:$0xf]
    %v126 = vld [vmem:[#allocation5 + $0x20] sm:$0xf]
    %v127 = vld [vmem:[#allocation5 + $0x24] sm:$0xf]
    %v128 = vld [vmem:[#allocation5 + $0x28] sm:$0xf]
    %v129 = vld [vmem:[#allocation5 + $0x2c] sm:$0xf]
    %v130 = vld [vmem:[#allocation5 + $0x30] sm:$0xf]
    %v131 = vld [vmem:[#allocation5 + $0x34] sm:$0xf]
    %v132 = vld [vmem:[#allocation5 + $0x38] sm:$0xf]
    %v133 = vld [vmem:[#allocation5 + $0x3c] sm:$0xf]
    %v134 = vld [vmem:[%s2] sm:$0x1]
    %v136 = vlaneseq
    %v137 = vshrl.u32 %v136, 7
    %v138 = vsub.s32 0, %v137
    %v139 = vrot.slane %v134, %v138
    %v157 = vunpack.c.l.b16 %v102
    %v158 = vunpack.c.l.b16 %v103
    %v159 = vunpack.c.l.b16 %v104
    %v160 = vunpack.c.l.b16 %v105
    %v161 = vunpack.c.l.b16 %v106
    %v162 = vunpack.c.l.b16 %v107
    %v163 = vunpack.c.l.b16 %v108
    %v164 = vunpack.c.l.b16 %v109
    %v165 = vunpack.c.l.b16 %v110
    %v166 = vunpack.c.l.b16 %v111
    %v167 = vunpack.c.l.b16 %v112
    %v168 = vunpack.c.l.b16 %v113
    %v169 = vunpack.c.l.b16 %v114
    %v170 = vunpack.c.l.b16 %v115
    %v171 = vunpack.c.l.b16 %v116
    %v172 = vunpack.c.l.b16 %v117
    %v173 = vpack.c.b16 %v158, %v157
    %v174 = vpack.c.b16 %v160, %v159
    %v175 = vpack.c.b16 %v162, %v161
    %v176 = vpack.c.b16 %v164, %v163
    %v177 = vpack.c.b16 %v166, %v165
    %v178 = vpack.c.b16 %v168, %v167
    %v179 = vpack.c.b16 %v170, %v169
    %v180 = vpack.c.b16 %v172, %v171
    %v205 = vunpack.c.l.b16 %v118
    %v206 = vunpack.c.l.b16 %v119
    %v207 = vunpack.c.l.b16 %v120
    %v208 = vunpack.c.l.b16 %v121
    %v209 = vunpack.c.l.b16 %v122
    %v210 = vunpack.c.l.b16 %v123
    %v211 = vunpack.c.l.b16 %v124
    %v212 = vunpack.c.l.b16 %v125
    %v213 = vunpack.c.l.b16 %v126
    %v214 = vunpack.c.l.b16 %v127
    %v215 = vunpack.c.l.b16 %v128
    %v216 = vunpack.c.l.b16 %v129
    %v217 = vunpack.c.l.b16 %v130
    %v218 = vunpack.c.l.b16 %v131
    %v219 = vunpack.c.l.b16 %v132
    %v220 = vunpack.c.l.b16 %v133
    %v221 = vpack.c.b16 %v206, %v205
    %v222 = vpack.c.b16 %v208, %v207
    %v223 = vpack.c.b16 %v210, %v209
    %v224 = vpack.c.b16 %v212, %v211
    %v225 = vpack.c.b16 %v214, %v213
    %v226 = vpack.c.b16 %v216, %v215
    %v227 = vpack.c.b16 %v218, %v217
    %v228 = vpack.c.b16 %v220, %v219
    %237 = vmatprep.subr.bf16.mxu0 0
    %238 = vmatpush1.bf16.msra.mxu0 %v221
    %239 = vmatprep.subr.bf16.mxu0 0
    %240 = vmatpush1.bf16.msra.mxu0 %v222
    %241 = vmatprep.subr.bf16.mxu0 0
    %242 = vmatpush1.bf16.msra.mxu0 %v223
    %243 = vmatprep.subr.bf16.mxu0 0
    %244 = vmatpush1.bf16.msra.mxu0 %v224
    %245 = vmatprep.subr.bf16.mxu0 0
    %246 = vmatpush1.bf16.msra.mxu0 %v225
    %247 = vmatprep.subr.bf16.mxu0 0
    %248 = vmatpush1.bf16.msra.mxu0 %v226
    %249 = vmatprep.subr.bf16.mxu0 0
    %250 = vmatpush1.bf16.msra.mxu0 %v227
    %251 = vmatprep.subr.bf16.mxu0 0
    %252 = vmatpush1.bf16.msra.mxu0 %v228
    %253 = vmatprep.subr.bf16.mxu0 0
    %254 = vmatpush1.bf16.msra.mxu0 0
    %255 = vmatprep.subr.bf16.mxu0 0
    %256 = vmatpush1.bf16.msra.mxu0 0
    %257 = vmatprep.subr.bf16.mxu0 0
    %258 = vmatpush1.bf16.msra.mxu0 0
    %259 = vmatprep.subr.bf16.mxu0 0
    %260 = vmatpush1.bf16.msra.mxu0 0
    %261 = vmatprep.subr.bf16.mxu0 0
    %262 = vmatpush1.bf16.msra.mxu0 0
    %263 = vmatprep.subr.bf16.mxu0 0
    %264 = vmatpush1.bf16.msra.mxu0 0
    %265 = vmatprep.subr.bf16.mxu0 0
    %266 = vmatpush1.bf16.msra.mxu0 0
    %267 = vmatprep.subr.bf16.mxu0 0
    %268 = vmatpush1.bf16.msra.mxu0 0
    %269 = vmatprep.mubr.bf16.mxu0 0
    %270 = vmatmul.mubr.bf16.gmra.mrb[0].mxu0 %v173
    %v271 = vpop.f32.mrb[0].mxu0
    %v272 = vadd.f32 %v139, %v271
    %v273 = vpop.f32.mrb[0].mxu0
    %v274 = vpop.f32.mrb[0].mxu0
    %v275 = vadd.f32 %v139, %v274
    %v276 = vpop.f32.mrb[0].mxu0
    %277 = vmatprep.mubr.bf16.mxu0 0
    %278 = vmatmul.mubr.bf16.gmra.mrb[0].mxu0 %v174
    %v279 = vpop.f32.mrb[0].mxu0
    %v280 = vadd.f32 %v139, %v279
    %v281 = vpop.f32.mrb[0].mxu0
    %v282 = vpop.f32.mrb[0].mxu0
    %v283 = vadd.f32 %v139, %v282
    %v284 = vpop.f32.mrb[0].mxu0
    %285 = vmatprep.mubr.bf16.mxu0 0
    %286 = vmatmul.mubr.bf16.gmra.mrb[0].mxu0 %v175
    %v287 = vpop.f32.mrb[0].mxu0
    %v288 = vadd.f32 %v139, %v287
    %v289 = vpop.f32.mrb[0].mxu0
    %v290 = vpop.f32.mrb[0].mxu0
    %v291 = vadd.f32 %v139, %v290
    %v292 = vpop.f32.mrb[0].mxu0
    %293 = vmatprep.mubr.bf16.mxu0 0
    %294 = vmatmul.mubr.bf16.gmra.mrb[0].mxu0 %v176
    %v295 = vpop.f32.mrb[0].mxu0
    %v296 = vadd.f32 %v139, %v295
    %v297 = vpop.f32.mrb[0].mxu0
    %v298 = vpop.f32.mrb[0].mxu0
    %v299 = vadd.f32 %v139, %v298
    %v300 = vpop.f32.mrb[0].mxu0
    %301 = vmatprep.mubr.bf16.mxu0 0
    %302 = vmatmul.mubr.bf16.gmra.mrb[0].mxu0 %v177
    %v303 = vpop.f32.mrb[0].mxu0
    %v304 = vadd.f32 %v139, %v303
    %v305 = vpop.f32.mrb[0].mxu0
    %v306 = vpop.f32.mrb[0].mxu0
    %v307 = vadd.f32 %v139, %v306
    %v308 = vpop.f32.mrb[0].mxu0
    %309 = vmatprep.mubr.bf16.mxu0 0
    %310 = vmatmul.mubr.bf16.gmra.mrb[0].mxu0 %v178
    %v311 = vpop.f32.mrb[0].mxu0
    %v312 = vadd.f32 %v139, %v311
    %v313 = vpop.f32.mrb[0].mxu0
    %v314 = vpop.f32.mrb[0].mxu0
    %v315 = vadd.f32 %v139, %v314
    %v316 = vpop.f32.mrb[0].mxu0
    %317 = vmatprep.mubr.bf16.mxu0 0
    %318 = vmatmul.mubr.bf16.gmra.mrb[0].mxu0 %v179
    %v319 = vpop.f32.mrb[0].mxu0
    %v320 = vadd.f32 %v139, %v319
    %v321 = vpop.f32.mrb[0].mxu0
    %v322 = vpop.f32.mrb[0].mxu0
    %v323 = vadd.f32 %v139, %v322
    %v324 = vpop.f32.mrb[0].mxu0
    %325 = vmatprep.mubr.bf16.mxu0 0
    %326 = vmatmul.mubr.bf16.gmra.mrb[0].mxu0 %v180
    %v327 = vpop.f32.mrb[0].mxu0
    %v328 = vadd.f32 %v139, %v327
    %v329 = vpop.f32.mrb[0].mxu0
    %v330 = vpop.f32.mrb[0].mxu0
    %v331 = vadd.f32 %v139, %v330
    %v332 = vpop.f32.mrb[0].mxu0
    %333 = vdwg.mxu0
    %v334 = vmax.f32 %v272, 0.0
    %v335 = vmax.f32 %v275, 0.0
    %v336 = vmax.f32 %v280, 0.0
    %v337 = vmax.f32 %v283, 0.0
    %v338 = vmax.f32 %v288, 0.0
    %v339 = vmax.f32 %v291, 0.0
    %v340 = vmax.f32 %v296, 0.0
    %v341 = vmax.f32 %v299, 0.0
    %v342 = vmax.f32 %v304, 0.0
    %v343 = vmax.f32 %v307, 0.0
    %v344 = vmax.f32 %v312, 0.0
    %v345 = vmax.f32 %v315, 0.0
    %v346 = vmax.f32 %v320, 0.0
    %v347 = vmax.f32 %v323, 0.0
    %v348 = vmax.f32 %v328, 0.0
    %v349 = vmax.f32 %v331, 0.0
    %v350 = vpack.c.bf16 %v335, %v334
    %v351 = vpack.c.bf16 %v337, %v336
    %v352 = vpack.c.bf16 %v339, %v338
    %v353 = vpack.c.bf16 %v341, %v340
    %v354 = vpack.c.bf16 %v343, %v342
    %v355 = vpack.c.bf16 %v345, %v344
    %v356 = vpack.c.bf16 %v347, %v346
    %v357 = vpack.c.bf16 %v349, %v348
    %v358 = vld [vmem:[#allocation7] sm:$0xf]
    %v359 = vld [vmem:[#allocation7 + $0x4] sm:$0xf]
    %v360 = vld [vmem:[#allocation7 + $0x8] sm:$0xf]
    %v361 = vld [vmem:[#allocation7 + $0xc] sm:$0xf]
    %v362 = vld [vmem:[#allocation7 + $0x10] sm:$0xf]
    %v363 = vld [vmem:[#allocation7 + $0x14] sm:$0xf]
    %v364 = vld [vmem:[#allocation7 + $0x18] sm:$0xf]
    %v365 = vld [vmem:[#allocation7 + $0x1c] sm:$0xf]
    %v366 = vld [vmem:[#allocation7 + $0x20] sm:$0xf]
    %v367 = vld [vmem:[#allocation7 + $0x24] sm:$0xf]
    %v368 = vld [vmem:[#allocation7 + $0x28] sm:$0xf]
    %v369 = vld [vmem:[#allocation7 + $0x2c] sm:$0xf]
    %v370 = vld [vmem:[#allocation7 + $0x30] sm:$0xf]
    %v371 = vld [vmem:[#allocation7 + $0x34] sm:$0xf]
    %v372 = vld [vmem:[#allocation7 + $0x38] sm:$0xf]
    %v373 = vld [vmem:[#allocation7 + $0x3c] sm:$0xf]
    %v374 = vld [vmem:[%s4] sm:$0x1]
    %v376 = vlaneseq
    %v377 = vshrl.u32 %v376, 7
    %v378 = vsub.s32 0, %v377
    %v379 = vrot.slane %v374, %v378
    %v397 = vunpack.c.l.b16 %v358
    %v398 = vunpack.c.l.b16 %v359
    %v399 = vunpack.c.l.b16 %v360
    %v400 = vunpack.c.l.b16 %v361
    %v401 = vunpack.c.l.b16 %v362
    %v402 = vunpack.c.l.b16 %v363
    %v403 = vunpack.c.l.b16 %v364
    %v404 = vunpack.c.l.b16 %v365
    %v405 = vunpack.c.l.b16 %v366
    %v406 = vunpack.c.l.b16 %v367
    %v407 = vunpack.c.l.b16 %v368
    %v408 = vunpack.c.l.b16 %v369
    %v409 = vunpack.c.l.b16 %v370
    %v410 = vunpack.c.l.b16 %v371
    %v411 = vunpack.c.l.b16 %v372
    %v412 = vunpack.c.l.b16 %v373
    %v413 = vpack.c.b16 %v398, %v397
    %v414 = vpack.c.b16 %v400, %v399
    %v415 = vpack.c.b16 %v402, %v401
    %v416 = vpack.c.b16 %v404, %v403
    %v417 = vpack.c.b16 %v406, %v405
    %v418 = vpack.c.b16 %v408, %v407
    %v419 = vpack.c.b16 %v410, %v409
    %v420 = vpack.c.b16 %v412, %v411
    %429 = vmatprep.subr.bf16.mxu0 0
    %430 = vmatpush1.bf16.msra.mxu0 %v413
    %431 = vmatprep.subr.bf16.mxu0 0
    %432 = vmatpush1.bf16.msra.mxu0 %v414
    %433 = vmatprep.subr.bf16.mxu0 0
    %434 = vmatpush1.bf16.msra.mxu0 %v415
    %435 = vmatprep.subr.bf16.mxu0 0
    %436 = vmatpush1.bf16.msra.mxu0 %v416
    %437 = vmatprep.subr.bf16.mxu0 0
    %438 = vmatpush1.bf16.msra.mxu0 %v417
    %439 = vmatprep.subr.bf16.mxu0 0
    %440 = vmatpush1.bf16.msra.mxu0 %v418
    %441 = vmatprep.subr.bf16.mxu0 0
    %442 = vmatpush1.bf16.msra.mxu0 %v419
    %443 = vmatprep.subr.bf16.mxu0 0
    %444 = vmatpush1.bf16.msra.mxu0 %v420
    %445 = vmatprep.subr.bf16.mxu0 0
    %446 = vmatpush1.bf16.msra.mxu0 0
    %447 = vmatprep.subr.bf16.mxu0 0
    %448 = vmatpush1.bf16.msra.mxu0 0
    %449 = vmatprep.subr.bf16.mxu0 0
    %450 = vmatpush1.bf16.msra.mxu0 0
    %451 = vmatprep.subr.bf16.mxu0 0
    %452 = vmatpush1.bf16.msra.mxu0 0
    %453 = vmatprep.subr.bf16.mxu0 0
    %454 = vmatpush1.bf16.msra.mxu0 0
    %455 = vmatprep.subr.bf16.mxu0 0
    %456 = vmatpush1.bf16.msra.mxu0 0
    %457 = vmatprep.subr.bf16.mxu0 0
    %458 = vmatpush1.bf16.msra.mxu0 0
    %459 = vmatprep.subr.bf16.mxu0 0
    %460 = vmatpush1.bf16.msra.mxu0 0
    %461 = vmatprep.mubr.bf16.mxu0 0
    %462 = vmatmul.mubr.bf16.gmra.mrb[0].mxu0 %v350
    %v463 = vpop.f32.mrb[0].mxu0
    %v464 = vadd.f32 %v379, %v463
    %v465 = vpop.f32.mrb[0].mxu0
    %v466 = vpop.f32.mrb[0].mxu0
    %v467 = vadd.f32 %v379, %v466
    %v468 = vpop.f32.mrb[0].mxu0
    %469 = vmatprep.mubr.bf16.mxu0 0
    %470 = vmatmul.mubr.bf16.gmra.mrb[0].mxu0 %v351
    %v471 = vpop.f32.mrb[0].mxu0
    %v472 = vadd.f32 %v379, %v471
    %v473 = vpop.f32.mrb[0].mxu0
    %v474 = vpop.f32.mrb[0].mxu0
    %v475 = vadd.f32 %v379, %v474
    %v476 = vpop.f32.mrb[0].mxu0
    %477 = vmatprep.mubr.bf16.mxu0 0
    %478 = vmatmul.mubr.bf16.gmra.mrb[0].mxu0 %v352
    %v479 = vpop.f32.mrb[0].mxu0
    %v480 = vadd.f32 %v379, %v479
    %v481 = vpop.f32.mrb[0].mxu0
    %v482 = vpop.f32.mrb[0].mxu0
    %v483 = vadd.f32 %v379, %v482
    %v484 = vpop.f32.mrb[0].mxu0
    %485 = vmatprep.mubr.bf16.mxu0 0
    %486 = vmatmul.mubr.bf16.gmra.mrb[0].mxu0 %v353
    %v487 = vpop.f32.mrb[0].mxu0
    %v488 = vadd.f32 %v379, %v487
    %v489 = vpop.f32.mrb[0].mxu0
    %v490 = vpop.f32.mrb[0].mxu0
    %v491 = vadd.f32 %v379, %v490
    %v492 = vpop.f32.mrb[0].mxu0
    %493 = vmatprep.mubr.bf16.mxu0 0
    %494 = vmatmul.mubr.bf16.gmra.mrb[0].mxu0 %v354
    %v495 = vpop.f32.mrb[0].mxu0
    %v496 = vadd.f32 %v379, %v495
    %v497 = vpop.f32.mrb[0].mxu0
    %v498 = vpop.f32.mrb[0].mxu0
    %v499 = vadd.f32 %v379, %v498
    %v500 = vpop.f32.mrb[0].mxu0
    %501 = vmatprep.mubr.bf16.mxu0 0
    %502 = vmatmul.mubr.bf16.gmra.mrb[0].mxu0 %v355
    %v503 = vpop.f32.mrb[0].mxu0
    %v504 = vadd.f32 %v379, %v503
    %v505 = vpop.f32.mrb[0].mxu0
    %v506 = vpop.f32.mrb[0].mxu0
    %v507 = vadd.f32 %v379, %v506
    %v508 = vpop.f32.mrb[0].mxu0
    %509 = vmatprep.mubr.bf16.mxu0 0
    %510 = vmatmul.mubr.bf16.gmra.mrb[0].mxu0 %v356
    %v511 = vpop.f32.mrb[0].mxu0
    %v512 = vadd.f32 %v379, %v511
    %v513 = vpop.f32.mrb[0].mxu0
    %v514 = vpop.f32.mrb[0].mxu0
    %v515 = vadd.f32 %v379, %v514
    %v516 = vpop.f32.mrb[0].mxu0
    %517 = vmatprep.mubr.bf16.mxu0 0
    %518 = vmatmul.mubr.bf16.gmra.mrb[0].mxu0 %v357
    %v519 = vpop.f32.mrb[0].mxu0
    %v520 = vadd.f32 %v379, %v519
    %v521 = vpop.f32.mrb[0].mxu0
    %v522 = vpop.f32.mrb[0].mxu0
    %v523 = vadd.f32 %v379, %v522
    %v524 = vpop.f32.mrb[0].mxu0
    %525 = vdwg.mxu0
    %v526 = vmax.f32 %v464, 0.0
    %v527 = vmax.f32 %v467, 0.0
    %v528 = vmax.f32 %v472, 0.0
    %v529 = vmax.f32 %v475, 0.0
    %v530 = vmax.f32 %v480, 0.0
    %v531 = vmax.f32 %v483, 0.0
    %v532 = vmax.f32 %v488, 0.0
    %v533 = vmax.f32 %v491, 0.0
    %v534 = vmax.f32 %v496, 0.0
    %v535 = vmax.f32 %v499, 0.0
    %v536 = vmax.f32 %v504, 0.0
    %v537 = vmax.f32 %v507, 0.0
    %v538 = vmax.f32 %v512, 0.0
    %v539 = vmax.f32 %v515, 0.0
    %v540 = vmax.f32 %v520, 0.0
    %v541 = vmax.f32 %v523, 0.0
    %v542 = vpack.c.bf16 %v527, %v526
    %v543 = vpack.c.bf16 %v529, %v528
    %v544 = vpack.c.bf16 %v531, %v530
    %v545 = vpack.c.bf16 %v533, %v532
    %v546 = vpack.c.bf16 %v535, %v534
    %v547 = vpack.c.bf16 %v537, %v536
    %v548 = vpack.c.bf16 %v539, %v538
    %v549 = vpack.c.bf16 %v541, %v540
    %v550 = vld [vmem:[#allocation8] sm:$0xff]
    %v551 = vld [vmem:[#allocation8 + $0x8] sm:$0xff]
    %v552 = vld [vmem:[#allocation8 + $0x10] sm:$0xff]
    %v553 = vld [vmem:[#allocation8 + $0x18] sm:$0xff]
    %v554 = vld [vmem:[#allocation8 + $0x20] sm:$0xff]
    %v555 = vld [vmem:[#allocation8 + $0x28] sm:$0xff]
    %v556 = vld [vmem:[#allocation8 + $0x30] sm:$0xff]
    %v557 = vld [vmem:[#allocation8 + $0x38] sm:$0xff]
    %v558 = vld [vmem:[#allocation8 + $0x40] sm:$0xff]
    %v559 = vld [vmem:[#allocation8 + $0x48] sm:$0xff]
    %v560 = vld [vmem:[#allocation8 + $0x50] sm:$0xff]
    %v561 = vld [vmem:[#allocation8 + $0x58] sm:$0xff]
    %v562 = vld [vmem:[#allocation8 + $0x60] sm:$0xff]
    %v563 = vld [vmem:[#allocation8 + $0x68] sm:$0xff]
    %v564 = vld [vmem:[#allocation8 + $0x70] sm:$0xff]
    %v565 = vld [vmem:[#allocation8 + $0x78] sm:$0xff]
    %v566 = vld [vmem:[%s6] sm:$0x3]
    %v568 = vlaneseq
    %v569 = vshrl.u32 %v568, 7
    %v570 = vsub.s32 0, %v569
    %v571 = vrot.slane %v566, %v570
    %v572 = vlaneseq
    %v573 = vshrl.u32 %v572, 7
    %v574 = vsub.s32 1, %v573
    %v575 = vrot.slane %v566, %v574
    %v594 = vunpack.c.l.b16 %v550
    %v595 = vunpack.c.h.b16 %v550
    %v596 = vunpack.c.l.b16 %v551
    %v597 = vunpack.c.h.b16 %v551
    %v598 = vunpack.c.l.b16 %v552
    %v599 = vunpack.c.h.b16 %v552
    %v600 = vunpack.c.l.b16 %v553
    %v601 = vunpack.c.h.b16 %v553
    %v602 = vunpack.c.l.b16 %v554
    %v603 = vunpack.c.h.b16 %v554
    %v604 = vunpack.c.l.b16 %v555
    %v605 = vunpack.c.h.b16 %v555
    %v606 = vunpack.c.l.b16 %v556
    %v607 = vunpack.c.h.b16 %v556
    %v608 = vunpack.c.l.b16 %v557
    %v609 = vunpack.c.h.b16 %v557
    %v610 = vunpack.c.l.b16 %v558
    %v611 = vunpack.c.h.b16 %v558
    %v612 = vunpack.c.l.b16 %v559
    %v613 = vunpack.c.h.b16 %v559
    %v614 = vunpack.c.l.b16 %v560
    %v615 = vunpack.c.h.b16 %v560
    %v616 = vunpack.c.l.b16 %v561
    %v617 = vunpack.c.h.b16 %v561
    %v618 = vunpack.c.l.b16 %v562
    %v619 = vunpack.c.h.b16 %v562
    %v620 = vunpack.c.l.b16 %v563
    %v621 = vunpack.c.h.b16 %v563
    %v622 = vunpack.c.l.b16 %v564
    %v623 = vunpack.c.h.b16 %v564
    %v624 = vunpack.c.l.b16 %v565
    %v625 = vunpack.c.h.b16 %v565
    %v626 = vpack.c.b16 %v596, %v594
    %v627 = vpack.c.b16 %v597, %v595
    %v628 = vpack.c.b16 %v600, %v598
    %v629 = vpack.c.b16 %v601, %v599
    %v630 = vpack.c.b16 %v604, %v602
    %v631 = vpack.c.b16 %v605, %v603
    %v632 = vpack.c.b16 %v608, %v606
    %v633 = vpack.c.b16 %v609, %v607
    %v634 = vpack.c.b16 %v612, %v610
    %v635 = vpack.c.b16 %v613, %v611
    %v636 = vpack.c.b16 %v616, %v614
    %v637 = vpack.c.b16 %v617, %v615
    %v638 = vpack.c.b16 %v620, %v618
    %v639 = vpack.c.b16 %v621, %v619
    %v640 = vpack.c.b16 %v624, %v622
    %v641 = vpack.c.b16 %v625, %v623
    %658 = vmatprep.subr.bf16.mxu0 %v627
    %659 = vmatpush1.bf16.msra.mxu0 %v626
    %660 = vmatprep.subr.bf16.mxu0 %v629
    %661 = vmatpush1.bf16.msra.mxu0 %v628
    %662 = vmatprep.subr.bf16.mxu0 %v631
    %663 = vmatpush1.bf16.msra.mxu0 %v630
    %664 = vmatprep.subr.bf16.mxu0 %v633
    %665 = vmatpush1.bf16.msra.mxu0 %v632
    %666 = vmatprep.subr.bf16.mxu0 %v635
    %667 = vmatpush1.bf16.msra.mxu0 %v634
    %668 = vmatprep.subr.bf16.mxu0 %v637
    %669 = vmatpush1.bf16.msra.mxu0 %v636
    %670 = vmatprep.subr.bf16.mxu0 %v639
    %671 = vmatpush1.bf16.msra.mxu0 %v638
    %672 = vmatprep.subr.bf16.mxu0 %v641
    %673 = vmatpush1.bf16.msra.mxu0 %v640
    %674 = vmatprep.subr.bf16.mxu0 0
    %675 = vmatpush1.bf16.msra.mxu0 0
    %676 = vmatprep.subr.bf16.mxu0 0
    %677 = vmatpush1.bf16.msra.mxu0 0
    %678 = vmatprep.subr.bf16.mxu0 0
    %679 = vmatpush1.bf16.msra.mxu0 0
    %680 = vmatprep.subr.bf16.mxu0 0
    %681 = vmatpush1.bf16.msra.mxu0 0
    %682 = vmatprep.subr.bf16.mxu0 0
    %683 = vmatpush1.bf16.msra.mxu0 0
    %684 = vmatprep.subr.bf16.mxu0 0
    %685 = vmatpush1.bf16.msra.mxu0 0
    %686 = vmatprep.subr.bf16.mxu0 0
    %687 = vmatpush1.bf16.msra.mxu0 0
    %688 = vmatprep.subr.bf16.mxu0 0
    %689 = vmatpush1.bf16.msra.mxu0 0
    %690 = vmatprep.mubr.bf16.mxu0 0
    %691 = vmatmul.mubr.bf16.gmra.mrb[0].mxu0 %v542
    %v692 = vpop.f32.mrb[0].mxu0
    %v693 = vadd.f32 %v571, %v692
    %v694 = vpop.f32.mrb[0].mxu0
    %v695 = vadd.f32 %v575, %v694
    %v696 = vpop.f32.mrb[0].mxu0
    %v697 = vadd.f32 %v571, %v696
    %v698 = vpop.f32.mrb[0].mxu0
    %v699 = vadd.f32 %v575, %v698
    %700 = vmatprep.mubr.bf16.mxu0 0
    %701 = vmatmul.mubr.bf16.gmra.mrb[0].mxu0 %v543
    %v702 = vpop.f32.mrb[0].mxu0
    %v703 = vadd.f32 %v571, %v702
    %v704 = vpop.f32.mrb[0].mxu0
    %v705 = vadd.f32 %v575, %v704
    %v706 = vpop.f32.mrb[0].mxu0
    %v707 = vadd.f32 %v571, %v706
    %v708 = vpop.f32.mrb[0].mxu0
    %v709 = vadd.f32 %v575, %v708
    %710 = vmatprep.mubr.bf16.mxu0 0
    %711 = vmatmul.mubr.bf16.gmra.mrb[0].mxu0 %v544
    %v712 = vpop.f32.mrb[0].mxu0
    %v713 = vadd.f32 %v571, %v712
    %v714 = vpop.f32.mrb[0].mxu0
    %v715 = vadd.f32 %v575, %v714
    %v716 = vpop.f32.mrb[0].mxu0
    %v717 = vadd.f32 %v571, %v716
    %v718 = vpop.f32.mrb[0].mxu0
    %v719 = vadd.f32 %v575, %v718
    %720 = vmatprep.mubr.bf16.mxu0 0
    %721 = vmatmul.mubr.bf16.gmra.mrb[0].mxu0 %v545
    %v722 = vpop.f32.mrb[0].mxu0
    %v723 = vadd.f32 %v571, %v722
    %v724 = vpop.f32.mrb[0].mxu0
    %v725 = vadd.f32 %v575, %v724
    %v726 = vpop.f32.mrb[0].mxu0
    %v727 = vadd.f32 %v571, %v726
    %v728 = vpop.f32.mrb[0].mxu0
    %v729 = vadd.f32 %v575, %v728
    %730 = vmatprep.mubr.bf16.mxu0 0
    %731 = vmatmul.mubr.bf16.gmra.mrb[0].mxu0 %v546
    %v732 = vpop.f32.mrb[0].mxu0
    %v733 = vadd.f32 %v571, %v732
    %v734 = vpop.f32.mrb[0].mxu0
    %v735 = vadd.f32 %v575, %v734
    %v736 = vpop.f32.mrb[0].mxu0
    %v737 = vadd.f32 %v571, %v736
    %v738 = vpop.f32.mrb[0].mxu0
    %v739 = vadd.f32 %v575, %v738
    %740 = vmatprep.mubr.bf16.mxu0 0
    %741 = vmatmul.mubr.bf16.gmra.mrb[0].mxu0 %v547
    %v742 = vpop.f32.mrb[0].mxu0
    %v743 = vadd.f32 %v571, %v742
    %v744 = vpop.f32.mrb[0].mxu0
    %v745 = vadd.f32 %v575, %v744
    %v746 = vpop.f32.mrb[0].mxu0
    %v747 = vadd.f32 %v571, %v746
    %v748 = vpop.f32.mrb[0].mxu0
    %v749 = vadd.f32 %v575, %v748
    %750 = vmatprep.mubr.bf16.mxu0 0
    %751 = vmatmul.mubr.bf16.gmra.mrb[0].mxu0 %v548
    %v752 = vpop.f32.mrb[0].mxu0
    %v753 = vadd.f32 %v571, %v752
    %v754 = vpop.f32.mrb[0].mxu0
    %v755 = vadd.f32 %v575, %v754
    %v756 = vpop.f32.mrb[0].mxu0
    %v757 = vadd.f32 %v571, %v756
    %v758 = vpop.f32.mrb[0].mxu0
    %v759 = vadd.f32 %v575, %v758
    %760 = vmatprep.mubr.bf16.mxu0 0
    %761 = vmatmul.mubr.bf16.gmra.mrb[0].mxu0 %v549
    %v762 = vpop.f32.mrb[0].mxu0
    %v763 = vadd.f32 %v571, %v762
    %v764 = vpop.f32.mrb[0].mxu0
    %v765 = vadd.f32 %v575, %v764
    %v766 = vpop.f32.mrb[0].mxu0
    %v767 = vadd.f32 %v571, %v766
    %v768 = vpop.f32.mrb[0].mxu0
    %v769 = vadd.f32 %v575, %v768
    %770 = vdwg.mxu0
    %v771 = vmax.f32 %v693, 0.0
    %v772 = vmax.f32 %v695, 0.0
    %v773 = vmax.f32 %v697, 0.0
    %v774 = vmax.f32 %v699, 0.0
    %v775 = vmax.f32 %v703, 0.0
    %v776 = vmax.f32 %v705, 0.0
    %v777 = vmax.f32 %v707, 0.0
    %v778 = vmax.f32 %v709, 0.0
    %v779 = vmax.f32 %v713, 0.0
    %v780 = vmax.f32 %v715, 0.0
    %v781 = vmax.f32 %v717, 0.0
    %v782 = vmax.f32 %v719, 0.0
    %v783 = vmax.f32 %v723, 0.0
    %v784 = vmax.f32 %v725, 0.0
    %v785 = vmax.f32 %v727, 0.0
    %v786 = vmax.f32 %v729, 0.0
    %v787 = vmax.f32 %v733, 0.0
    %v788 = vmax.f32 %v735, 0.0
    %v789 = vmax.f32 %v737, 0.0
    %v790 = vmax.f32 %v739, 0.0
    %v791 = vmax.f32 %v743, 0.0
    %v792 = vmax.f32 %v745, 0.0
    %v793 = vmax.f32 %v747, 0.0
    %v794 = vmax.f32 %v749, 0.0
    %v795 = vmax.f32 %v753, 0.0
    %v796 = vmax.f32 %v755, 0.0
    %v797 = vmax.f32 %v757, 0.0
    %v798 = vmax.f32 %v759, 0.0
    %v799 = vmax.f32 %v763, 0.0
    %v800 = vmax.f32 %v765, 0.0
    %v801 = vmax.f32 %v767, 0.0
    %v802 = vmax.f32 %v769, 0.0
    %v803 = vpack.c.bf16 %v773, %v771
    %v804 = vpack.c.bf16 %v774, %v772
    %v805 = vpack.c.bf16 %v777, %v775
    %v806 = vpack.c.bf16 %v778, %v776
    %v807 = vpack.c.bf16 %v781, %v779
    %v808 = vpack.c.bf16 %v782, %v780
    %v809 = vpack.c.bf16 %v785, %v783
    %v810 = vpack.c.bf16 %v786, %v784
    %v811 = vpack.c.bf16 %v789, %v787
    %v812 = vpack.c.bf16 %v790, %v788
    %v813 = vpack.c.bf16 %v793, %v791
    %v814 = vpack.c.bf16 %v794, %v792
    %v815 = vpack.c.bf16 %v797, %v795
    %v816 = vpack.c.bf16 %v798, %v796
    %v817 = vpack.c.bf16 %v801, %v799
    %v818 = vpack.c.bf16 %v802, %v800
    %v819 = vld [vmem:[#allocation10] sm:$0xf]
    %v820 = vld [vmem:[#allocation10 + $0x4] sm:$0xf]
    %v821 = vld [vmem:[#allocation10 + $0x8] sm:$0xf]
    %v822 = vld [vmem:[#allocation10 + $0xc] sm:$0xf]
    %v823 = vld [vmem:[#allocation10 + $0x10] sm:$0xf]
    %v824 = vld [vmem:[#allocation10 + $0x14] sm:$0xf]
    %v825 = vld [vmem:[#allocation10 + $0x18] sm:$0xf]
    %v826 = vld [vmem:[#allocation10 + $0x1c] sm:$0xf]
    %v827 = vld [vmem:[#allocation10 + $0x20] sm:$0xf]
    %v828 = vld [vmem:[#allocation10 + $0x24] sm:$0xf]
    %v829 = vld [vmem:[#allocation10 + $0x28] sm:$0xf]
    %v830 = vld [vmem:[#allocation10 + $0x2c] sm:$0xf]
    %v831 = vld [vmem:[#allocation10 + $0x30] sm:$0xf]
    %v832 = vld [vmem:[#allocation10 + $0x34] sm:$0xf]
    %v833 = vld [vmem:[#allocation10 + $0x38] sm:$0xf]
    %v834 = vld [vmem:[#allocation10 + $0x3c] sm:$0xf]
    %v835 = vld [vmem:[#allocation10 + $0x40] sm:$0xf]
    %v836 = vld [vmem:[#allocation10 + $0x44] sm:$0xf]
    %v837 = vld [vmem:[#allocation10 + $0x48] sm:$0xf]
    %v838 = vld [vmem:[#allocation10 + $0x4c] sm:$0xf]
    %v839 = vld [vmem:[#allocation10 + $0x50] sm:$0xf]
    %v840 = vld [vmem:[#allocation10 + $0x54] sm:$0xf]
    %v841 = vld [vmem:[#allocation10 + $0x58] sm:$0xf]
    %v842 = vld [vmem:[#allocation10 + $0x5c] sm:$0xf]
    %v843 = vld [vmem:[#allocation10 + $0x60] sm:$0xf]
    %v844 = vld [vmem:[#allocation10 + $0x64] sm:$0xf]
    %v845 = vld [vmem:[#allocation10 + $0x68] sm:$0xf]
    %v846 = vld [vmem:[#allocation10 + $0x6c] sm:$0xf]
    %v847 = vld [vmem:[#allocation10 + $0x70] sm:$0xf]
    %v848 = vld [vmem:[#allocation10 + $0x74] sm:$0xf]
    %v849 = vld [vmem:[#allocation10 + $0x78] sm:$0xf]
    %v850 = vld [vmem:[#allocation10 + $0x7c] sm:$0xf]
    %v851 = vld [vmem:[%s8] sm:$0x1]
    %v853 = vlaneseq
    %v854 = vshrl.u32 %v853, 7
    %v855 = vsub.s32 0, %v854
    %v856 = vrot.slane %v851, %v855
    %v890 = vunpack.c.l.b16 %v819
    %v891 = vunpack.c.l.b16 %v820
    %v892 = vunpack.c.l.b16 %v821
    %v893 = vunpack.c.l.b16 %v822
    %v894 = vunpack.c.l.b16 %v823
    %v895 = vunpack.c.l.b16 %v824
    %v896 = vunpack.c.l.b16 %v825
    %v897 = vunpack.c.l.b16 %v826
    %v898 = vunpack.c.l.b16 %v827
    %v899 = vunpack.c.l.b16 %v828
    %v900 = vunpack.c.l.b16 %v829
    %v901 = vunpack.c.l.b16 %v830
    %v902 = vunpack.c.l.b16 %v831
    %v903 = vunpack.c.l.b16 %v832
    %v904 = vunpack.c.l.b16 %v833
    %v905 = vunpack.c.l.b16 %v834
    %v906 = vunpack.c.l.b16 %v835
    %v907 = vunpack.c.l.b16 %v836
    %v908 = vunpack.c.l.b16 %v837
    %v909 = vunpack.c.l.b16 %v838
    %v910 = vunpack.c.l.b16 %v839
    %v911 = vunpack.c.l.b16 %v840
    %v912 = vunpack.c.l.b16 %v841
    %v913 = vunpack.c.l.b16 %v842
    %v914 = vunpack.c.l.b16 %v843
    %v915 = vunpack.c.l.b16 %v844
    %v916 = vunpack.c.l.b16 %v845
    %v917 = vunpack.c.l.b16 %v846
    %v918 = vunpack.c.l.b16 %v847
    %v919 = vunpack.c.l.b16 %v848
    %v920 = vunpack.c.l.b16 %v849
    %v921 = vunpack.c.l.b16 %v850
    %v922 = vpack.c.b16 %v891, %v890
    %v923 = vpack.c.b16 %v893, %v892
    %v924 = vpack.c.b16 %v895, %v894
    %v925 = vpack.c.b16 %v897, %v896
    %v926 = vpack.c.b16 %v899, %v898
    %v927 = vpack.c.b16 %v901, %v900
    %v928 = vpack.c.b16 %v903, %v902
    %v929 = vpack.c.b16 %v905, %v904
    %v930 = vpack.c.b16 %v907, %v906
    %v931 = vpack.c.b16 %v909, %v908
    %v932 = vpack.c.b16 %v911, %v910
    %v933 = vpack.c.b16 %v913, %v912
    %v934 = vpack.c.b16 %v915, %v914
    %v935 = vpack.c.b16 %v917, %v916
    %v936 = vpack.c.b16 %v919, %v918
    %v937 = vpack.c.b16 %v921, %v920
    %954 = vmatprep.subr.bf16.mxu0 0
    %955 = vmatpush1.bf16.msra.mxu0 %v922
    %956 = vmatprep.subr.bf16.mxu0 0
    %957 = vmatpush1.bf16.msra.mxu0 %v923
    %958 = vmatprep.subr.bf16.mxu0 0
    %959 = vmatpush1.bf16.msra.mxu0 %v924
    %960 = vmatprep.subr.bf16.mxu0 0
    %961 = vmatpush1.bf16.msra.mxu0 %v925
    %962 = vmatprep.subr.bf16.mxu0 0
    %963 = vmatpush1.bf16.msra.mxu0 %v926
    %964 = vmatprep.subr.bf16.mxu0 0
    %965 = vmatpush1.bf16.msra.mxu0 %v927
    %966 = vmatprep.subr.bf16.mxu0 0
    %967 = vmatpush1.bf16.msra.mxu0 %v928
    %968 = vmatprep.subr.bf16.mxu0 0
    %969 = vmatpush1.bf16.msra.mxu0 %v929
    %970 = vmatprep.subr.bf16.mxu0 0
    %971 = vmatpush1.bf16.msra.mxu0 %v930
    %972 = vmatprep.subr.bf16.mxu0 0
    %973 = vmatpush1.bf16.msra.mxu0 %v931
    %974 = vmatprep.subr.bf16.mxu0 0
    %975 = vmatpush1.bf16.msra.mxu0 %v932
    %976 = vmatprep.subr.bf16.mxu0 0
    %977 = vmatpush1.bf16.msra.mxu0 %v933
    %978 = vmatprep.subr.bf16.mxu0 0
    %979 = vmatpush1.bf16.msra.mxu0 %v934
    %980 = vmatprep.subr.bf16.mxu0 0
    %981 = vmatpush1.bf16.msra.mxu0 %v935
    %982 = vmatprep.subr.bf16.mxu0 0
    %983 = vmatpush1.bf16.msra.mxu0 %v936
    %984 = vmatprep.subr.bf16.mxu0 0
    %985 = vmatpush1.bf16.msra.mxu0 %v937
    %986 = vmatprep.mubr.bf16.mxu0 %v804
    %987 = vmatmul.mubr.bf16.gmra.mrb[0].mxu0 %v803
    %v988 = vpop.f32.mrb[0].mxu0
    %v989 = vadd.f32 %v856, %v988
    %v990 = vpop.f32.mrb[0].mxu0
    %v991 = vpop.f32.mrb[0].mxu0
    %v992 = vadd.f32 %v856, %v991
    %v993 = vpop.f32.mrb[0].mxu0
    %994 = vmatprep.mubr.bf16.mxu0 %v806
    %995 = vmatmul.mubr.bf16.gmra.mrb[0].mxu0 %v805
    %v996 = vpop.f32.mrb[0].mxu0
    %v997 = vadd.f32 %v856, %v996
    %v998 = vpop.f32.mrb[0].mxu0
    %v999 = vpop.f32.mrb[0].mxu0
    %v1000 = vadd.f32 %v856, %v999
    %v1001 = vpop.f32.mrb[0].mxu0
    %1002 = vmatprep.mubr.bf16.mxu0 %v808
    %1003 = vmatmul.mubr.bf16.gmra.mrb[0].mxu0 %v807
    %v1004 = vpop.f32.mrb[0].mxu0
    %v1005 = vadd.f32 %v856, %v1004
    %v1006 = vpop.f32.mrb[0].mxu0
    %v1007 = vpop.f32.mrb[0].mxu0
    %v1008 = vadd.f32 %v856, %v1007
    %v1009 = vpop.f32.mrb[0].mxu0
    %1010 = vmatprep.mubr.bf16.mxu0 %v810
    %1011 = vmatmul.mubr.bf16.gmra.mrb[0].mxu0 %v809
    %v1012 = vpop.f32.mrb[0].mxu0
    %v1013 = vadd.f32 %v856, %v1012
    %v1014 = vpop.f32.mrb[0].mxu0
    %v1015 = vpop.f32.mrb[0].mxu0
    %v1016 = vadd.f32 %v856, %v1015
    %v1017 = vpop.f32.mrb[0].mxu0
    %1018 = vmatprep.mubr.bf16.mxu0 %v812
    %1019 = vmatmul.mubr.bf16.gmra.mrb[0].mxu0 %v811
    %v1020 = vpop.f32.mrb[0].mxu0
    %v1021 = vadd.f32 %v856, %v1020
    %v1022 = vpop.f32.mrb[0].mxu0
    %v1023 = vpop.f32.mrb[0].mxu0
    %v1024 = vadd.f32 %v856, %v1023
    %v1025 = vpop.f32.mrb[0].mxu0
    %1026 = vmatprep.mubr.bf16.mxu0 %v814
    %1027 = vmatmul.mubr.bf16.gmra.mrb[0].mxu0 %v813
    %v1028 = vpop.f32.mrb[0].mxu0
    %v1029 = vadd.f32 %v856, %v1028
    %v1030 = vpop.f32.mrb[0].mxu0
    %v1031 = vpop.f32.mrb[0].mxu0
    %v1032 = vadd.f32 %v856, %v1031
    %v1033 = vpop.f32.mrb[0].mxu0
    %1034 = vmatprep.mubr.bf16.mxu0 %v816
    %1035 = vmatmul.mubr.bf16.gmra.mrb[0].mxu0 %v815
    %v1036 = vpop.f32.mrb[0].mxu0
    %v1037 = vadd.f32 %v856, %v1036
    %v1038 = vpop.f32.mrb[0].mxu0
    %v1039 = vpop.f32.mrb[0].mxu0
    %v1040 = vadd.f32 %v856, %v1039
    %v1041 = vpop.f32.mrb[0].mxu0
    %1042 = vmatprep.mubr.bf16.mxu0 %v818
    %1043 = vmatmul.mubr.bf16.gmra.mrb[0].mxu0 %v817
    %v1044 = vpop.f32.mrb[0].mxu0
    %v1045 = vadd.f32 %v856, %v1044
    %v1046 = vpop.f32.mrb[0].mxu0
    %v1047 = vpop.f32.mrb[0].mxu0
    %v1048 = vadd.f32 %v856, %v1047
    %v1049 = vpop.f32.mrb[0].mxu0
    %1050 = vdwg.mxu0
    %1067 = vrot.lane.b32.xlu0 %v989, 127
    %v1068 = vpop.permute.xlu0 %1067
    %1069 = vrot.lane.b32.xlu0 %v992, 127
    %v1070 = vpop.permute.xlu0 %1069
    %1071 = vrot.lane.b32.xlu0 %v997, 127
    %v1072 = vpop.permute.xlu0 %1071
    %1073 = vrot.lane.b32.xlu0 %v1000, 127
    %v1074 = vpop.permute.xlu0 %1073
    %1075 = vrot.lane.b32.xlu0 %v1005, 127
    %v1076 = vpop.permute.xlu0 %1075
    %1077 = vrot.lane.b32.xlu0 %v1008, 127
    %v1078 = vpop.permute.xlu0 %1077
    %1079 = vrot.lane.b32.xlu0 %v1013, 127
    %v1080 = vpop.permute.xlu0 %1079
    %1081 = vrot.lane.b32.xlu0 %v1016, 127
    %v1082 = vpop.permute.xlu0 %1081
    %1083 = vrot.lane.b32.xlu0 %v1021, 127
    %v1084 = vpop.permute.xlu0 %1083
    %1085 = vrot.lane.b32.xlu0 %v1024, 127
    %v1086 = vpop.permute.xlu0 %1085
    %1087 = vrot.lane.b32.xlu0 %v1029, 127
    %v1088 = vpop.permute.xlu0 %1087
    %1089 = vrot.lane.b32.xlu0 %v1032, 127
    %v1090 = vpop.permute.xlu0 %1089
    %1091 = vrot.lane.b32.xlu0 %v1037, 127
    %v1092 = vpop.permute.xlu0 %1091
    %1093 = vrot.lane.b32.xlu0 %v1040, 127
    %v1094 = vpop.permute.xlu0 %1093
    %1095 = vrot.lane.b32.xlu0 %v1045, 127
    %v1096 = vpop.permute.xlu0 %1095
    %1097 = vrot.lane.b32.xlu0 %v1048, 127
    %v1098 = vpop.permute.xlu0 %1097
    %vm1115 = vcmask 31744
    %v1116 = vsel %vm1115, %v1068, 0.0
    %1117 = vadd.xlane.f32.xlu0 %v1116
    %v1118 = vpop.xlane.xlu0 %1117
    %v1119 = vsel %vm1115, %v1070, 0.0
    %1120 = vadd.xlane.f32.xlu0 %v1119
    %v1121 = vpop.xlane.xlu0 %1120
    %v1122 = vsel %vm1115, %v1072, 0.0
    %1123 = vadd.xlane.f32.xlu0 %v1122
    %v1124 = vpop.xlane.xlu0 %1123
    %v1125 = vsel %vm1115, %v1074, 0.0
    %1126 = vadd.xlane.f32.xlu0 %v1125
    %v1127 = vpop.xlane.xlu0 %1126
    %v1128 = vsel %vm1115, %v1076, 0.0
    %1129 = vadd.xlane.f32.xlu0 %v1128
    %v1130 = vpop.xlane.xlu0 %1129
    %v1131 = vsel %vm1115, %v1078, 0.0
    %1132 = vadd.xlane.f32.xlu0 %v1131
    %v1133 = vpop.xlane.xlu0 %1132
    %v1134 = vsel %vm1115, %v1080, 0.0
    %1135 = vadd.xlane.f32.xlu0 %v1134
    %v1136 = vpop.xlane.xlu0 %1135
    %v1137 = vsel %vm1115, %v1082, 0.0
    %1138 = vadd.xlane.f32.xlu0 %v1137
    %v1139 = vpop.xlane.xlu0 %1138
    %v1140 = vsel %vm1115, %v1084, 0.0
    %1141 = vadd.xlane.f32.xlu0 %v1140
    %v1142 = vpop.xlane.xlu0 %1141
    %v1143 = vsel %vm1115, %v1086, 0.0
    %1144 = vadd.xlane.f32.xlu0 %v1143
    %v1145 = vpop.xlane.xlu0 %1144
    %v1146 = vsel %vm1115, %v1088, 0.0
    %1147 = vadd.xlane.f32.xlu0 %v1146
    %v1148 = vpop.xlane.xlu0 %1147
    %v1149 = vsel %vm1115, %v1090, 0.0
    %1150 = vadd.xlane.f32.xlu0 %v1149
    %v1151 = vpop.xlane.xlu0 %1150
    %v1152 = vsel %vm1115, %v1092, 0.0
    %1153 = vadd.xlane.f32.xlu0 %v1152
    %v1154 = vpop.xlane.xlu0 %1153
    %v1155 = vsel %vm1115, %v1094, 0.0
    %1156 = vadd.xlane.f32.xlu0 %v1155
    %v1157 = vpop.xlane.xlu0 %1156
    %v1158 = vsel %vm1115, %v1096, 0.0
    %1159 = vadd.xlane.f32.xlu0 %v1158
    %v1160 = vpop.xlane.xlu0 %1159
    %v1161 = vsel %vm1115, %v1098, 0.0
    %1162 = vadd.xlane.f32.xlu0 %v1161
    %v1163 = vpop.xlane.xlu0 %1162
    %v1164 = vrcp.pop 4.0
    %v1165 = vmul.f32 %v1118, %v1164
    %v1166 = vmul.f32 %v1121, %v1164
    %v1167 = vmul.f32 %v1124, %v1164
    %v1168 = vmul.f32 %v1127, %v1164
    %v1169 = vmul.f32 %v1130, %v1164
    %v1170 = vmul.f32 %v1133, %v1164
    %v1171 = vmul.f32 %v1136, %v1164
    %v1172 = vmul.f32 %v1139, %v1164
    %v1173 = vmul.f32 %v1142, %v1164
    %v1174 = vmul.f32 %v1145, %v1164
    %v1175 = vmul.f32 %v1148, %v1164
    %v1176 = vmul.f32 %v1151, %v1164
    %v1177 = vmul.f32 %v1154, %v1164
    %v1178 = vmul.f32 %v1157, %v1164
    %v1179 = vmul.f32 %v1160, %v1164
    %v1180 = vmul.f32 %v1163, %v1164
    %v1181 = vsub.f32 %v989, %v1165
    %v1182 = vsub.f32 %v992, %v1166
    %v1183 = vsub.f32 %v997, %v1167
    %v1184 = vsub.f32 %v1000, %v1168
    %v1185 = vsub.f32 %v1005, %v1169
    %v1186 = vsub.f32 %v1008, %v1170
    %v1187 = vsub.f32 %v1013, %v1171
    %v1188 = vsub.f32 %v1016, %v1172
    %v1189 = vsub.f32 %v1021, %v1173
    %v1190 = vsub.f32 %v1024, %v1174
    %v1191 = vsub.f32 %v1029, %v1175
    %v1192 = vsub.f32 %v1032, %v1176
    %v1193 = vsub.f32 %v1037, %v1177
    %v1194 = vsub.f32 %v1040, %v1178
    %v1195 = vsub.f32 %v1045, %v1179
    %v1196 = vsub.f32 %v1048, %v1180
    %1198 = vset.pattern.permute.xlu0 0
    %1199 = vperm.xlu0 %1198, %v1181
    %v1200 = vpop.permute.xlu0 %1199
    %1203 = vset.pattern.permute.xlu0 0
    %1204 = vperm.xlu0 %1203, %v1182
    %v1205 = vpop.permute.xlu0 %1204
    %1208 = vset.pattern.permute.xlu0 0
    %1209 = vperm.xlu0 %1208, %v1183
    %v1210 = vpop.permute.xlu0 %1209
    %1213 = vset.pattern.permute.xlu0 0
    %1214 = vperm.xlu0 %1213, %v1184
    %v1215 = vpop.permute.xlu0 %1214
    %1218 = vset.pattern.permute.xlu0 0
    %1219 = vperm.xlu0 %1218, %v1185
    %v1220 = vpop.permute.xlu0 %1219
    %1223 = vset.pattern.permute.xlu0 0
    %1224 = vperm.xlu0 %1223, %v1186
    %v1225 = vpop.permute.xlu0 %1224
    %1228 = vset.pattern.permute.xlu0 0
    %1229 = vperm.xlu0 %1228, %v1187
    %v1230 = vpop.permute.xlu0 %1229
    %1233 = vset.pattern.permute.xlu0 0
    %1234 = vperm.xlu0 %1233, %v1188
    %v1235 = vpop.permute.xlu0 %1234
    %1238 = vset.pattern.permute.xlu0 0
    %1239 = vperm.xlu0 %1238, %v1189
    %v1240 = vpop.permute.xlu0 %1239
    %1243 = vset.pattern.permute.xlu0 0
    %1244 = vperm.xlu0 %1243, %v1190
    %v1245 = vpop.permute.xlu0 %1244
    %1248 = vset.pattern.permute.xlu0 0
    %1249 = vperm.xlu0 %1248, %v1191
    %v1250 = vpop.permute.xlu0 %1249
    %1253 = vset.pattern.permute.xlu0 0
    %1254 = vperm.xlu0 %1253, %v1192
    %v1255 = vpop.permute.xlu0 %1254
    %1258 = vset.pattern.permute.xlu0 0
    %1259 = vperm.xlu0 %1258, %v1193
    %v1260 = vpop.permute.xlu0 %1259
    %1263 = vset.pattern.permute.xlu0 0
    %1264 = vperm.xlu0 %1263, %v1194
    %v1265 = vpop.permute.xlu0 %1264
    %1268 = vset.pattern.permute.xlu0 0
    %1269 = vperm.xlu0 %1268, %v1195
    %v1270 = vpop.permute.xlu0 %1269
    %1273 = vset.pattern.permute.xlu0 0
    %1274 = vperm.xlu0 %1273, %v1196
    %v1275 = vpop.permute.xlu0 %1274
    %v1277 = vadd.f32 %v989, %v1200
    %v1278 = vadd.f32 %v992, %v1205
    %v1279 = vadd.f32 %v997, %v1210
    %v1280 = vadd.f32 %v1000, %v1215
    %v1281 = vadd.f32 %v1005, %v1220
    %v1282 = vadd.f32 %v1008, %v1225
    %v1283 = vadd.f32 %v1013, %v1230
    %v1284 = vadd.f32 %v1016, %v1235
    %v1285 = vadd.f32 %v1021, %v1240
    %v1286 = vadd.f32 %v1024, %v1245
    %v1287 = vadd.f32 %v1029, %v1250
    %v1288 = vadd.f32 %v1032, %v1255
    %v1289 = vadd.f32 %v1037, %v1260
    %v1290 = vadd.f32 %v1040, %v1265
    %v1291 = vadd.f32 %v1045, %v1270
    %v1292 = vadd.f32 %v1048, %v1275
    %1293 = vst [vmem:[#allocation11] sm:$0xff] %v1277
    %1294 = vst [vmem:[#allocation11 + $0x8] sm:$0xff] %v1278
    %1295 = vst [vmem:[#allocation11 + $0x10] sm:$0xff] %v1279
    %1296 = vst [vmem:[#allocation11 + $0x18] sm:$0xff] %v1280
    %1297 = vst [vmem:[#allocation11 + $0x20] sm:$0xff] %v1281
    %1298 = vst [vmem:[#allocation11 + $0x28] sm:$0xff] %v1282
    %1299 = vst [vmem:[#allocation11 + $0x30] sm:$0xff] %v1283
    %1300 = vst [vmem:[#allocation11 + $0x38] sm:$0xff] %v1284
    %1301 = vst [vmem:[#allocation11 + $0x40] sm:$0xff] %v1285
    %1302 = vst [vmem:[#allocation11 + $0x48] sm:$0xff] %v1286
    %1303 = vst [vmem:[#allocation11 + $0x50] sm:$0xff] %v1287
    %1304 = vst [vmem:[#allocation11 + $0x58] sm:$0xff] %v1288
    %1305 = vst [vmem:[#allocation11 + $0x60] sm:$0xff] %v1289
    %1306 = vst [vmem:[#allocation11 + $0x68] sm:$0xff] %v1290
    %1307 = vst [vmem:[#allocation11 + $0x70] sm:$0xff] %v1291
    %1308 = vst [vmem:[#allocation11 + $0x78] sm:$0xff] %v1292
    // Predicated region
    $region58: #{tpu_custom_call.1} parent=1 // pred_check
      _
    $region59: #{tpu_custom_call.1} parent=1 // pred_check_branch
      %1310 = sbr.rel (0) target = $region61
    $region60: #{tpu_custom_call.1} parent=1 // pred_region
      %s1312 = ssub.s32 2048, 2048
      %1313 = vsyncadd [#allocation4], %s1312
      %s1314 = sshll.u32 [#allocation11], 4
      %s1315 = int_to_ptr.vmem [resolvable:$true] %s1314
      %1320 = dma.vmem_to_hbm [thread:$0]  %s1315, 2048, %s9, [#allocation4], 128, 128, 8
    $region61: #{tpu_custom_call.1} parent=1 // pred_fallthru
      _
    // Predicated region
    $region62: #{tpu_custom_call.1} parent=1 // pred_check
      _
    $region63: #{tpu_custom_call.1} parent=1 // pred_check_branch
      %1322 = sbr.rel (0) target = $region65
    $region64: #{tpu_custom_call.1} parent=1 // pred_region
      %1323 = dma.done [#allocation4], 2048
    $region65: #{tpu_custom_call.1} parent=1 // pred_fallthru
      _
    %1324 = vsyncpa [#allocation3], 1
    %1325 = vsyncpa [#allocation6], 1
    %1326 = vsyncpa [#allocation9], 1
    %1327 = vsyncpa [#allocation4], 1

</llo_original>
